<compile_context>
chip_gen: v7x
topology: tpu7x:2x2x1
jax: 0.10.0
libtpu: 0.0.40
codegen_flags: <defaults>
</compile_context>

<pallas_src>
import numpy as np
import jax
import jax.numpy as jnp
from jax.experimental import pallas as pl
from jax.experimental.pallas import tpu as pltpu

H_IN = W_IN = 10          # the module hardcodes size_linear_unit(10) -> 8x8x16 = 1024
H_OUT = W_OUT = 8
C_OUT = 16
HIDDEN = 128
FLAT = H_OUT * W_OUT * C_OUT      # 1024 conv-output lanes, order (h, w, c)
LANE = 128


def _round_up(x, m):
    return (x + m - 1) // m * m


# ----------------------------- Pallas kernel -------------------------------

def fused_kernel(x_ref, wtoe_ref, bconv_ref, wfc_ref, bfc_ref,
                 wout_ref, bout_ref, o_ref):
    """conv(Toeplitz matmul)+ReLU -> fc_hidden+ReLU -> output head, one batch tile.

    x_ref    : (TB, K_in)   bf16  flattened NHWC input, zero-padded to K_in lanes
    wtoe_ref : (K_in, 1024) bf16  block-banded conv weight, cols = (h, w, c_out)
    bconv_ref: (1, 1024)    f32   conv bias tiled over (h, w)
    wfc_ref  : (1024, 128)  bf16  fc_hidden weight, rows reordered to (h, w, c)
    bfc_ref  : (1, 128)     f32
    wout_ref : (128, 128)   bf16  output weight zero-padded to 128 cols
    bout_ref : (1, 128)     f32   zero-padded
    o_ref    : (TB, 128)    f32
    """
    conv = jnp.dot(x_ref[...], wtoe_ref[...], preferred_element_type=jnp.float32)
    conv = jnp.maximum(conv + bconv_ref[...], 0.0)                 # (TB, 1024)

    hid = jnp.dot(conv.astype(jnp.bfloat16), wfc_ref[...],
                  preferred_element_type=jnp.float32)
    hid = jnp.maximum(hid + bfc_ref[...], 0.0)                     # (TB, 128)

    out = jnp.dot(hid.astype(jnp.bfloat16), wout_ref[...],
                  preferred_element_type=jnp.float32)
    o_ref[...] = out + bout_ref[...]                               # (TB, 128) lane-dense


# ------------------------------ wrapper -------------------------------------

def cnn_uadqn_forward(x, params, n_out, tb=512):
    """x: (N, 10, 10, Cin) NHWC float32 -> (N, n_out)."""
    if x.ndim == 3:                              # mirrors the PyTorch unsqueeze(0)
        x = x[None]
    n = x.shape[0]
    k_in = params["wtoe_k"].shape[0]             # lane-padded flattened input (512 for Cin=4)
    out_pad = params["wout_k"].shape[1]          # 128

    # Batch tile: multiple of 16 (bf16 sublane packing), clamped for tiny batches;
    # shrink so the "parallel" grid axis has >= 2 steps (both v7x TensorCores busy).
    n16 = _round_up(n, 16)
    tb = _round_up(max(16, min(tb, n16)), 16)
    if n16 > 16 and (n16 + tb - 1) // tb < 2:
        tb = _round_up((n16 + 1) // 2, 16)
    padded_n = _round_up(n, tb)

    # Flatten NHWC, cast to bf16 (halves the input HBM stream) and lane-pad K to k_in.
    x_flat = x.reshape(n, -1).astype(jnp.bfloat16)
    x_flat = jnp.pad(x_flat, ((0, padded_n - n), (0, k_in - x_flat.shape[1])))

    flops = 2 * padded_n * (k_in * FLAT + FLAT * HIDDEN + HIDDEN * out_pad)
    bytes_accessed = (padded_n * (k_in * 2 + out_pad * 4)
                      + 2 * (k_in * FLAT + FLAT * HIDDEN + HIDDEN * out_pad)
                      + 4 * (FLAT + HIDDEN + out_pad))

    out = pl.pallas_call(
        fused_kernel,
        out_shape=jax.ShapeDtypeStruct((padded_n, out_pad), jnp.float32),
        grid=(padded_n // tb,),
        in_specs=[
            pl.BlockSpec((tb, k_in), lambda i: (i, 0)),            # x (batch-tiled)
            pl.BlockSpec((k_in, FLAT), lambda i: (0, 0)),          # Toeplitz conv W (resident)
            pl.BlockSpec((1, FLAT), lambda i: (0, 0)),             # conv bias
            pl.BlockSpec((FLAT, HIDDEN), lambda i: (0, 0)),        # fc_hidden W (resident)
            pl.BlockSpec((1, HIDDEN), lambda i: (0, 0)),           # fc_hidden bias
            pl.BlockSpec((HIDDEN, out_pad), lambda i: (0, 0)),     # output W (padded)
            pl.BlockSpec((1, out_pad), lambda i: (0, 0)),          # output bias (padded)
        ],
        out_specs=pl.BlockSpec((tb, out_pad), lambda i: (i, 0)),
        compiler_params=pltpu.CompilerParams(dimension_semantics=("parallel",)),
        cost_estimate=pl.CostEstimate(flops=flops, transcendentals=0,
                                      bytes_accessed=bytes_accessed),
    )(x_flat, params["wtoe_k"], params["bconv_k"], params["wfc_k"],
      params["bfc_k"], params["wout_k"], params["bout_k"])

    return out[:n, :n_out]


# ------------------------- parameter construction ---------------------------

def init_params(key, cin, n_out, gain):
    """Deterministic orthogonal weights / zero biases (mirrors init_weights)."""
    ortho = jax.nn.initializers.orthogonal(scale=gain)
    k1, k2, k3 = jax.random.split(key, 3)
    wc = ortho(k1, (C_OUT, cin * 9), jnp.float32).reshape(C_OUT, cin, 3, 3)   # torch (o,i,kh,kw)
    bc = jnp.zeros((C_OUT,), jnp.float32)
    wfc = ortho(k2, (HIDDEN, FLAT), jnp.float32)                              # torch (out,in), NCHW flat
    bfc = jnp.zeros((HIDDEN,), jnp.float32)
    wout = ortho(k3, (n_out, HIDDEN), jnp.float32)
    bout = jnp.zeros((n_out,), jnp.float32)
    torch_params = dict(wc=wc, bc=bc, wfc=wfc, bfc=bfc, wout=wout, bout=bout)

    # --- kernel-layout params ---
    flat_in = H_IN * W_IN * cin                  # 400 for Cin=4
    k_in = _round_up(flat_in, LANE)              # 512
    out_pad = _round_up(n_out, LANE)             # 128

    # Block-banded (Toeplitz) conv weight: one matmul computes the whole conv.
    # wtoe[(ih,iw,ci), (h,w,co)] = wc[co, ci, ih-h, iw-w] when both deltas are in [0,3).
    wck = np.transpose(np.asarray(wc), (2, 3, 1, 0))              # (dy, dx, ci, co)
    wtoe = np.zeros((H_IN, W_IN, cin, H_OUT, W_OUT, C_OUT), np.float32)
    for h in range(H_OUT):
        for w in range(W_OUT):
            wtoe[h:h + 3, w:w + 3, :, h, w, :] = wck
    wtoe = wtoe.reshape(flat_in, FLAT)
    wtoe = np.pad(wtoe, ((0, k_in - flat_in), (0, 0)))            # lane-pad K 400 -> 512
    wtoe_k = jnp.asarray(wtoe, jnp.bfloat16)

    bconv_k = jnp.tile(bc, H_OUT * W_OUT).reshape(1, FLAT)        # f32, lanes = (h, w, c)

    # fc_hidden weight reindexed from torch NCHW-flat (c,h,w) to (h,w,c) rows.
    wfc_k = jnp.transpose(wfc.reshape(HIDDEN, C_OUT, H_OUT, W_OUT),
                          (2, 3, 1, 0)).reshape(FLAT, HIDDEN).astype(jnp.bfloat16)
    bfc_k = bfc.reshape(1, HIDDEN)

    # Output head zero-padded to a full 128-lane tile (unmasked stores; pad lanes stay 0).
    wout_k = jnp.zeros((HIDDEN, out_pad), jnp.float32).at[:, :n_out].set(wout.T)
    wout_k = wout_k.astype(jnp.bfloat16)
    bout_k = jnp.zeros((1, out_pad), jnp.float32).at[0, :n_out].set(bout)

    kernel_params = dict(wtoe_k=wtoe_k, bconv_k=bconv_k, wfc_k=wfc_k,
                         bfc_k=bfc_k, wout_k=wout_k, bout_k=bout_k)
    return torch_params, kernel_params


def reference_forward(x, p):
    """Pure-JAX f32 mirror of the PyTorch forward (same NHWC input convention)."""
    n = x.shape[0]
    conv = jnp.zeros((n, H_OUT, W_OUT, C_OUT), jnp.float32)
    for dy in range(3):
        for dx in range(3):
            patch = x[:, dy:dy + H_OUT, dx:dx + W_OUT, :]
            conv = conv + jnp.einsum("nhwc,oc->nhwo", patch,
                                     p["wc"][:, :, dy, dx], precision="highest")
    conv = jax.nn.relu(conv + p["bc"])
    flat = jnp.transpose(conv, (0, 3, 1, 2)).reshape(n, -1)       # NCHW flatten (torch)
    h = jax.nn.relu(jnp.dot(flat, p["wfc"].T, precision="highest") + p["bfc"])
    return jnp.dot(h, p["wout"].T, precision="highest") + p["bout"]


if __name__ == "__main__":
    N, CIN, N_OUT = 2, 4, 6        # batch=2, obs channels=4, n_outputs_1=6
    key = jax.random.PRNGKey(0)
    kp, kx = jax.random.split(key)
    torch_p, kern_p = init_params(kp, CIN, N_OUT, gain=float(np.sqrt(2.0)))
    x = jax.random.normal(kx, (N, H_IN, W_IN, CIN), jnp.float32)

    out = cnn_uadqn_forward(x, kern_p, N_OUT)
    out = jax.block_until_ready(out)

    ref = reference_forward(x, torch_p)
    assert out.shape == (N, N_OUT), out.shape
    # Tolerance reflects bf16 MXU operands (f32 accumulation) vs the all-f32 reference.
    np.testing.assert_allclose(np.asarray(out), np.asarray(ref),
                               rtol=2e-2, atol=2e-2)
    print("KERNEL_OK")
</pallas_src>

<mosaic_0001>
module attributes {stable_mosaic.version = 11 : i64} {
  func.func @fused_kernel(%arg0: i32, %arg1: memref<16x512xbf16, #tpu.memory_space<vmem>>, %arg2: memref<512x1024xbf16, #tpu.memory_space<vmem>>, %arg3: memref<1x1024xf32, #tpu.memory_space<vmem>>, %arg4: memref<1024x128xbf16, #tpu.memory_space<vmem>>, %arg5: memref<1x128xf32, #tpu.memory_space<vmem>>, %arg6: memref<128x128xbf16, #tpu.memory_space<vmem>>, %arg7: memref<1x128xf32, #tpu.memory_space<vmem>>, %arg8: memref<16x128xf32, #tpu.memory_space<vmem>>) attributes {dimension_semantics = [#tpu.dimension_semantics<parallel>], iteration_bounds = array<i64: 1>, scalar_prefetch = 0 : i64, scratch_operands = 0 : i64, tpu.core_type = #tpu.core_type<tc>, window_params = [{transform_indices = @transform_0, window_bounds = array<i64: 16, 512>}, {pipeline_mode = #tpu.pipeline_mode<synchronous>, transform_indices = @transform_1, window_bounds = array<i64: 512, 1024>}, {pipeline_mode = #tpu.pipeline_mode<synchronous>, transform_indices = @transform_2, window_bounds = array<i64: 1, 1024>}, {pipeline_mode = #tpu.pipeline_mode<synchronous>, transform_indices = @transform_3, window_bounds = array<i64: 1024, 128>}, {pipeline_mode = #tpu.pipeline_mode<synchronous>, transform_indices = @transform_4, window_bounds = array<i64: 1, 128>}, {pipeline_mode = #tpu.pipeline_mode<synchronous>, transform_indices = @transform_5, window_bounds = array<i64: 128, 128>}, {pipeline_mode = #tpu.pipeline_mode<synchronous>, transform_indices = @transform_6, window_bounds = array<i64: 1, 128>}, {transform_indices = @transform_7, window_bounds = array<i64: 16, 128>}]} {
    %c0 = arith.constant 0 : index
    %c0_0 = arith.constant 0 : index
    %0 = vector.load %arg1[%c0, %c0_0] : memref<16x512xbf16, #tpu.memory_space<vmem>>, vector<16x512xbf16>
    %c0_1 = arith.constant 0 : index
    %c0_2 = arith.constant 0 : index
    %1 = vector.load %arg2[%c0_1, %c0_2] : memref<512x1024xbf16, #tpu.memory_space<vmem>>, vector<512x1024xbf16>
    %cst = arith.constant dense<0.000000e+00> : vector<16x1024xf32>
    %2 = tpu.matmul %0, %1, %cst {dimension_numbers = #tpu.dot_dimension_numbers<[1], [0], [0], [1], [0, 0, 1, 1], [], []>} : vector<16x512xbf16>, vector<512x1024xbf16>, vector<16x1024xf32> -> vector<16x1024xf32>
    %c0_3 = arith.constant 0 : index
    %c0_4 = arith.constant 0 : index
    %3 = vector.load %arg3[%c0_3, %c0_4] : memref<1x1024xf32, #tpu.memory_space<vmem>>, vector<1x1024xf32>
    %4 = vector.broadcast %3 : vector<1x1024xf32> to vector<16x1024xf32>
    %5 = arith.addf %2, %4 : vector<16x1024xf32>
    %cst_5 = arith.constant 0.000000e+00 : f32
    %6 = vector.broadcast %cst_5 : f32 to vector<16x1024xf32>
    %7 = arith.maximumf %5, %6 : vector<16x1024xf32>
    %8 = arith.truncf %7 : vector<16x1024xf32> to vector<16x1024xbf16>
    %c0_6 = arith.constant 0 : index
    %c0_7 = arith.constant 0 : index
    %9 = vector.load %arg4[%c0_6, %c0_7] : memref<1024x128xbf16, #tpu.memory_space<vmem>>, vector<1024x128xbf16>
    %cst_8 = arith.constant dense<0.000000e+00> : vector<16x128xf32>
    %10 = tpu.matmul %8, %9, %cst_8 {dimension_numbers = #tpu.dot_dimension_numbers<[1], [0], [0], [1], [0, 0, 1, 1], [], []>} : vector<16x1024xbf16>, vector<1024x128xbf16>, vector<16x128xf32> -> vector<16x128xf32>
    %c0_9 = arith.constant 0 : index
    %c0_10 = arith.constant 0 : index
    %11 = vector.load %arg5[%c0_9, %c0_10] : memref<1x128xf32, #tpu.memory_space<vmem>>, vector<1x128xf32>
    %12 = vector.broadcast %11 : vector<1x128xf32> to vector<16x128xf32>
    %13 = arith.addf %10, %12 : vector<16x128xf32>
    %cst_11 = arith.constant 0.000000e+00 : f32
    %14 = vector.broadcast %cst_11 : f32 to vector<16x128xf32>
    %15 = arith.maximumf %13, %14 : vector<16x128xf32>
    %16 = arith.truncf %15 : vector<16x128xf32> to vector<16x128xbf16>
    %c0_12 = arith.constant 0 : index
    %c0_13 = arith.constant 0 : index
    %17 = vector.load %arg6[%c0_12, %c0_13] : memref<128x128xbf16, #tpu.memory_space<vmem>>, vector<128x128xbf16>
    %cst_14 = arith.constant dense<0.000000e+00> : vector<16x128xf32>
    %18 = tpu.matmul %16, %17, %cst_14 {dimension_numbers = #tpu.dot_dimension_numbers<[1], [0], [0], [1], [0, 0, 1, 1], [], []>} : vector<16x128xbf16>, vector<128x128xbf16>, vector<16x128xf32> -> vector<16x128xf32>
    %c0_15 = arith.constant 0 : index
    %c0_16 = arith.constant 0 : index
    %19 = vector.load %arg7[%c0_15, %c0_16] : memref<1x128xf32, #tpu.memory_space<vmem>>, vector<1x128xf32>
    %20 = vector.broadcast %19 : vector<1x128xf32> to vector<16x128xf32>
    %21 = arith.addf %18, %20 : vector<16x128xf32>
    %c0_17 = arith.constant 0 : index
    %c0_18 = arith.constant 0 : index
    %22 = vector.load %arg8[%c0_17, %c0_18] : memref<16x128xf32, #tpu.memory_space<vmem>>, vector<16x128xf32>
    tpu.vector_store %arg8[%c0_17, %c0_18], %21 {strides = array<i32>} : memref<16x128xf32, #tpu.memory_space<vmem>>, vector<16x128xf32>,
    return
  }
  func.func @transform_0(%arg0: i32) -> (i32, i32) {
    %c0_i32 = arith.constant 0 : i32
    %c0_i32_0 = arith.constant 0 : i32
    return %arg0, %c0_i32 : i32, i32
  }
  func.func @transform_1(%arg0: i32) -> (i32, i32) {
    %c0_i32 = arith.constant 0 : i32
    %c0_i32_0 = arith.constant 0 : i32
    %c0_i32_1 = arith.constant 0 : i32
    return %c0_i32, %c0_i32_0 : i32, i32
  }
  func.func @transform_2(%arg0: i32) -> (i32, i32) {
    %c0_i32 = arith.constant 0 : i32
    %c0_i32_0 = arith.constant 0 : i32
    %c0_i32_1 = arith.constant 0 : i32
    return %c0_i32, %c0_i32_0 : i32, i32
  }
  func.func @transform_3(%arg0: i32) -> (i32, i32) {
    %c0_i32 = arith.constant 0 : i32
    %c0_i32_0 = arith.constant 0 : i32
    %c0_i32_1 = arith.constant 0 : i32
    return %c0_i32, %c0_i32_0 : i32, i32
  }
  func.func @transform_4(%arg0: i32) -> (i32, i32) {
    %c0_i32 = arith.constant 0 : i32
    %c0_i32_0 = arith.constant 0 : i32
    %c0_i32_1 = arith.constant 0 : i32
    return %c0_i32, %c0_i32_0 : i32, i32
  }
  func.func @transform_5(%arg0: i32) -> (i32, i32) {
    %c0_i32 = arith.constant 0 : i32
    %c0_i32_0 = arith.constant 0 : i32
    %c0_i32_1 = arith.constant 0 : i32
    return %c0_i32, %c0_i32_0 : i32, i32
  }
  func.func @transform_6(%arg0: i32) -> (i32, i32) {
    %c0_i32 = arith.constant 0 : i32
    %c0_i32_0 = arith.constant 0 : i32
    %c0_i32_1 = arith.constant 0 : i32
    return %c0_i32, %c0_i32_0 : i32, i32
  }
  func.func @transform_7(%arg0: i32) -> (i32, i32) {
    %c0_i32 = arith.constant 0 : i32
    %c0_i32_0 = arith.constant 0 : i32
    return %arg0, %c0_i32 : i32, i32
  }
}

</mosaic_0001>

<llo_original>
// kernel: tpu_custom_call.1
$region0: #{tpu_custom_call.1}
  #allocation0 [shape = 'u32[]', space=smem, size = 0x4, offset = 0x4, fixed_abs, tag = 'smem constant byte address 0x4 - core index']
  #allocation1 [shape = 'u32[144,128]{1,0:T(1,128)}', space=vmem, size = 0x12000, scoped, tag = 'internal scratch']
  %s0 = inlined_call_operand.hbm [shape: bf16[16,512], index: 0, kind: input, shape index: {}]
  %s1 = inlined_call_operand.hbm [shape: bf16[512,1024], index: 1, kind: input, shape index: {}]
  %s2 = inlined_call_operand.hbm [shape: f32[1,1024], index: 2, kind: input, shape index: {}]
  %s3 = inlined_call_operand.hbm [shape: bf16[1024,128], index: 3, kind: input, shape index: {}]
  %s4 = inlined_call_operand.vmem [shape: f32[1,128], index: 4, kind: input, shape index: {}]
  %s5 = inlined_call_operand.hbm [shape: bf16[128,128], index: 5, kind: input, shape index: {}]
  %s6 = inlined_call_operand.vmem [shape: f32[1,128], index: 6, kind: input, shape index: {}]
  %s7 = inlined_call_operand.hbm [shape: f32[16,128], index: 7, kind: output, shape index: {}]
  %s8 = sld [smem:[#allocation0]]
  $region58: #{tpu_custom_call.1} parent=0
    _
  %s10 = ssub.s32 1, %s8
  %s11 = scalar_select 0, %s10, %s8
  $region1: #{tpu_custom_call.1} parent=0
    #allocation2 [shape = 'u8[16384]{0}', space=vmem, size = 0x4000, scoped, tag = 'input window, operand 0, single buffered']
    #allocation3 [shape = 's32[1]{0}', space=sflag, size = 0x4, scoped, tag = 'scoped memory for tpu_custom_call.1']
    #allocation4 [shape = 's32[1]{0}', space=sflag, size = 0x4, scoped, tag = 'scoped memory for tpu_custom_call.1']
    #allocation5 [shape = 'u8[1048576]{0}', space=vmem, size = 0x100000, scoped, tag = 'input window, operand 1, single buffered']
    #allocation6 [shape = 's32[1]{0}', space=sflag, size = 0x4, scoped, tag = 'scoped memory for tpu_custom_call.1']
    #allocation7 [shape = 'u8[4096]{0}', space=vmem, size = 0x1000, scoped, tag = 'input window, operand 2, single buffered']
    #allocation8 [shape = 'u8[262144]{0}', space=vmem, size = 0x40000, scoped, tag = 'input window, operand 3, single buffered']
    #allocation9 [shape = 's32[1]{0}', space=sflag, size = 0x4, scoped, tag = 'scoped memory for tpu_custom_call.1']
    #allocation10 [shape = 'u8[32768]{0}', space=vmem, size = 0x8000, scoped, tag = 'input window, operand 5, single buffered']
    #allocation11 [shape = 'u8[8192]{0}', space=vmem, size = 0x2000, scoped, tag = 'output window, operand 0, single buffered']
    %12 = vsyncpa [#allocation3], 0
    %13 = vsyncpa [#allocation6], 0
    %14 = vsyncpa [#allocation9], 0
    %15 = vsyncpa [#allocation4], 0
    // Predicated region
    $region2: #{tpu_custom_call.1} parent=1 // pred_check
      _
    $region3: #{tpu_custom_call.1} parent=1 // pred_check_branch
      %17 = sbr.rel (0) target = $region5
    $region4: #{tpu_custom_call.1} parent=1 // pred_region
      %s19 = ssub.s32 512, 512
      %20 = vsyncadd [#allocation3], %s19
      %s21 = sshll.u32 [#allocation2], 4
      %s22 = int_to_ptr.vmem [resolvable:$true] %s21
      %27 = dma.hbm_to_vmem [thread:$0]  %s0, 512, %s22, [#allocation3], 256, 256, 16
    $region5: #{tpu_custom_call.1} parent=1 // pred_fallthru
      _
    // Predicated region
    $region6: #{tpu_custom_call.1} parent=1 // pred_check
      _
    $region7: #{tpu_custom_call.1} parent=1 // pred_check_branch
      %29 = sbr.rel (0) target = $region9
    $region8: #{tpu_custom_call.1} parent=1 // pred_region
      %s31 = ssub.s32 32768, 32768
      %32 = vsyncadd [#allocation6], %s31
      %s33 = sshll.u32 [#allocation5], 4
      %s34 = int_to_ptr.vmem [resolvable:$true] %s33
      %39 = dma.hbm_to_vmem [thread:$0]  %s1, 32768, %s34, [#allocation6], 512, 512, 32
    $region9: #{tpu_custom_call.1} parent=1 // pred_fallthru
      _
    // Predicated region
    $region10: #{tpu_custom_call.1} parent=1 // pred_check
      _
    $region11: #{tpu_custom_call.1} parent=1 // pred_check_branch
      %41 = sbr.rel (0) target = $region13
    $region12: #{tpu_custom_call.1} parent=1 // pred_region
      %s43 = ssub.s32 128, 128
      %44 = vsyncadd [#allocation6], %s43
      %s46 = sshll.u32 [#allocation7], 4
      %s47 = int_to_ptr.vmem [resolvable:$true] %s46
      %49 = dma.hbm_to_vmem [thread:$0]  %s2, 128, %s47, [#allocation6]
    $region13: #{tpu_custom_call.1} parent=1 // pred_fallthru
      _
    // Predicated region
    $region14: #{tpu_custom_call.1} parent=1 // pred_check
      _
    $region15: #{tpu_custom_call.1} parent=1 // pred_check_branch
      %51 = sbr.rel (0) target = $region17
    $region16: #{tpu_custom_call.1} parent=1 // pred_region
      %s53 = ssub.s32 8192, 8192
      %54 = vsyncadd [#allocation9], %s53
      %s55 = sshll.u32 [#allocation8], 4
      %s56 = int_to_ptr.vmem [resolvable:$true] %s55
      %61 = dma.hbm_to_vmem [thread:$0]  %s3, 8192, %s56, [#allocation9], 64, 64, 4
    $region17: #{tpu_custom_call.1} parent=1 // pred_fallthru
      _
    // Predicated region
    $region18: #{tpu_custom_call.1} parent=1 // pred_check
      _
    $region19: #{tpu_custom_call.1} parent=1 // pred_check_branch
      %63 = sbr.rel (0) target = $region21
    $region20: #{tpu_custom_call.1} parent=1 // pred_region
      _
    $region21: #{tpu_custom_call.1} parent=1 // pred_fallthru
      _
    // Predicated region
    $region22: #{tpu_custom_call.1} parent=1 // pred_check
      _
    $region23: #{tpu_custom_call.1} parent=1 // pred_check_branch
      %65 = sbr.rel (0) target = $region25
    $region24: #{tpu_custom_call.1} parent=1 // pred_region
      %s67 = ssub.s32 1024, 1024
      %68 = vsyncadd [#allocation9], %s67
      %s69 = sshll.u32 [#allocation10], 4
      %s70 = int_to_ptr.vmem [resolvable:$true] %s69
      %75 = dma.hbm_to_vmem [thread:$0]  %s5, 1024, %s70, [#allocation9], 64, 64, 4
    $region25: #{tpu_custom_call.1} parent=1 // pred_fallthru
      _
    // Predicated region
    $region26: #{tpu_custom_call.1} parent=1 // pred_check
      _
    $region27: #{tpu_custom_call.1} parent=1 // pred_check_branch
      %77 = sbr.rel (0) target = $region29
    $region28: #{tpu_custom_call.1} parent=1 // pred_region
      _
    $region29: #{tpu_custom_call.1} parent=1 // pred_fallthru
      _
    // Predicated region
    $region30: #{tpu_custom_call.1} parent=1 // pred_check
      _
    $region31: #{tpu_custom_call.1} parent=1 // pred_check_branch
      %79 = sbr.rel (0) target = $region33
    $region32: #{tpu_custom_call.1} parent=1 // pred_region
      %80 = dma.done [#allocation3], 512
    $region33: #{tpu_custom_call.1} parent=1 // pred_fallthru
      _
    // Predicated region
    $region34: #{tpu_custom_call.1} parent=1 // pred_check
      _
    $region35: #{tpu_custom_call.1} parent=1 // pred_check_branch
      %82 = sbr.rel (0) target = $region37
    $region36: #{tpu_custom_call.1} parent=1 // pred_region
      %83 = dma.done [#allocation6], 32768
    $region37: #{tpu_custom_call.1} parent=1 // pred_fallthru
      _
    // Predicated region
    $region38: #{tpu_custom_call.1} parent=1 // pred_check
      _
    $region39: #{tpu_custom_call.1} parent=1 // pred_check_branch
      %85 = sbr.rel (0) target = $region41
    $region40: #{tpu_custom_call.1} parent=1 // pred_region
      %86 = dma.done [#allocation6], 128
    $region41: #{tpu_custom_call.1} parent=1 // pred_fallthru
      _
    // Predicated region
    $region42: #{tpu_custom_call.1} parent=1 // pred_check
      _
    $region43: #{tpu_custom_call.1} parent=1 // pred_check_branch
      %88 = sbr.rel (0) target = $region45
    $region44: #{tpu_custom_call.1} parent=1 // pred_region
      %89 = dma.done [#allocation9], 8192
    $region45: #{tpu_custom_call.1} parent=1 // pred_fallthru
      _
    // Predicated region
    $region46: #{tpu_custom_call.1} parent=1 // pred_check
      _
    $region47: #{tpu_custom_call.1} parent=1 // pred_check_branch
      %91 = sbr.rel (0) target = $region49
    $region48: #{tpu_custom_call.1} parent=1 // pred_region
      %92 = dma.done [#allocation9], 1024
    $region49: #{tpu_custom_call.1} parent=1 // pred_fallthru
      _
    %v94 = vld [vmem:[#allocation2] sm:$0xff]
    %v95 = vld [vmem:[#allocation2 + $0x8] sm:$0xff]
    %v96 = vld [vmem:[#allocation2 + $0x10] sm:$0xff]
    %v97 = vld [vmem:[#allocation2 + $0x18] sm:$0xff]
    %v98 = vld [vmem:[#allocation5] sm:$0xff]
    %v99 = vld [vmem:[#allocation5 + $0x8] sm:$0xff]
    %v100 = vld [vmem:[#allocation5 + $0x10] sm:$0xff]
    %v101 = vld [vmem:[#allocation5 + $0x18] sm:$0xff]
    %v102 = vld [vmem:[#allocation5 + $0x20] sm:$0xff]
    %v103 = vld [vmem:[#allocation5 + $0x28] sm:$0xff]
    %v104 = vld [vmem:[#allocation5 + $0x30] sm:$0xff]
    %v105 = vld [vmem:[#allocation5 + $0x38] sm:$0xff]
    %v106 = vld [vmem:[#allocation5 + $0x40] sm:$0xff]
    %v107 = vld [vmem:[#allocation5 + $0x48] sm:$0xff]
    %v108 = vld [vmem:[#allocation5 + $0x50] sm:$0xff]
    %v109 = vld [vmem:[#allocation5 + $0x58] sm:$0xff]
    %v110 = vld [vmem:[#allocation5 + $0x60] sm:$0xff]
    %v111 = vld [vmem:[#allocation5 + $0x68] sm:$0xff]
    %v112 = vld [vmem:[#allocation5 + $0x70] sm:$0xff]
    %v113 = vld [vmem:[#allocation5 + $0x78] sm:$0xff]
    %v114 = vld [vmem:[#allocation5 + $0x80] sm:$0xff]
    %v115 = vld [vmem:[#allocation5 + $0x88] sm:$0xff]
    %v116 = vld [vmem:[#allocation5 + $0x90] sm:$0xff]
    %v117 = vld [vmem:[#allocation5 + $0x98] sm:$0xff]
    %v118 = vld [vmem:[#allocation5 + $0xa0] sm:$0xff]
    %v119 = vld [vmem:[#allocation5 + $0xa8] sm:$0xff]
    %v120 = vld [vmem:[#allocation5 + $0xb0] sm:$0xff]
    %v121 = vld [vmem:[#allocation5 + $0xb8] sm:$0xff]
    %v122 = vld [vmem:[#allocation5 + $0xc0] sm:$0xff]
    %v123 = vld [vmem:[#allocation5 + $0xc8] sm:$0xff]
    %v124 = vld [vmem:[#allocation5 + $0xd0] sm:$0xff]
    %v125 = vld [vmem:[#allocation5 + $0xd8] sm:$0xff]
    %v126 = vld [vmem:[#allocation5 + $0xe0] sm:$0xff]
    %v127 = vld [vmem:[#allocation5 + $0xe8] sm:$0xff]
    %v128 = vld [vmem:[#allocation5 + $0xf0] sm:$0xff]
    %v129 = vld [vmem:[#allocation5 + $0xf8] sm:$0xff]
    %v130 = vld [vmem:[#allocation5 + $0x100] sm:$0xff]
    %v131 = vld [vmem:[#allocation5 + $0x108] sm:$0xff]
    %v132 = vld [vmem:[#allocation5 + $0x110] sm:$0xff]
    %v133 = vld [vmem:[#allocation5 + $0x118] sm:$0xff]
    %v134 = vld [vmem:[#allocation5 + $0x120] sm:$0xff]
    %v135 = vld [vmem:[#allocation5 + $0x128] sm:$0xff]
    %v136 = vld [vmem:[#allocation5 + $0x130] sm:$0xff]
    %v137 = vld [vmem:[#allocation5 + $0x138] sm:$0xff]
    %v138 = vld [vmem:[#allocation5 + $0x140] sm:$0xff]
    %v139 = vld [vmem:[#allocation5 + $0x148] sm:$0xff]
    %v140 = vld [vmem:[#allocation5 + $0x150] sm:$0xff]
    %v141 = vld [vmem:[#allocation5 + $0x158] sm:$0xff]
    %v142 = vld [vmem:[#allocation5 + $0x160] sm:$0xff]
    %v143 = vld [vmem:[#allocation5 + $0x168] sm:$0xff]
    %v144 = vld [vmem:[#allocation5 + $0x170] sm:$0xff]
    %v145 = vld [vmem:[#allocation5 + $0x178] sm:$0xff]
    %v146 = vld [vmem:[#allocation5 + $0x180] sm:$0xff]
    %v147 = vld [vmem:[#allocation5 + $0x188] sm:$0xff]
    %v148 = vld [vmem:[#allocation5 + $0x190] sm:$0xff]
    %v149 = vld [vmem:[#allocation5 + $0x198] sm:$0xff]
    %v150 = vld [vmem:[#allocation5 + $0x1a0] sm:$0xff]
    %v151 = vld [vmem:[#allocation5 + $0x1a8] sm:$0xff]
    %v152 = vld [vmem:[#allocation5 + $0x1b0] sm:$0xff]
    %v153 = vld [vmem:[#allocation5 + $0x1b8] sm:$0xff]
    %v154 = vld [vmem:[#allocation5 + $0x1c0] sm:$0xff]
    %v155 = vld [vmem:[#allocation5 + $0x1c8] sm:$0xff]
    %v156 = vld [vmem:[#allocation5 + $0x1d0] sm:$0xff]
    %v157 = vld [vmem:[#allocation5 + $0x1d8] sm:$0xff]
    %v158 = vld [vmem:[#allocation5 + $0x1e0] sm:$0xff]
    %v159 = vld [vmem:[#allocation5 + $0x1e8] sm:$0xff]
    %v160 = vld [vmem:[#allocation5 + $0x1f0] sm:$0xff]
    %v161 = vld [vmem:[#allocation5 + $0x1f8] sm:$0xff]
    %v162 = vld [vmem:[#allocation5 + $0x200] sm:$0xff]
    %v163 = vld [vmem:[#allocation5 + $0x208] sm:$0xff]
    %v164 = vld [vmem:[#allocation5 + $0x210] sm:$0xff]
    %v165 = vld [vmem:[#allocation5 + $0x218] sm:$0xff]
    %v166 = vld [vmem:[#allocation5 + $0x220] sm:$0xff]
    %v167 = vld [vmem:[#allocation5 + $0x228] sm:$0xff]
    %v168 = vld [vmem:[#allocation5 + $0x230] sm:$0xff]
    %v169 = vld [vmem:[#allocation5 + $0x238] sm:$0xff]
    %v170 = vld [vmem:[#allocation5 + $0x240] sm:$0xff]
    %v171 = vld [vmem:[#allocation5 + $0x248] sm:$0xff]
    %v172 = vld [vmem:[#allocation5 + $0x250] sm:$0xff]
    %v173 = vld [vmem:[#allocation5 + $0x258] sm:$0xff]
    %v174 = vld [vmem:[#allocation5 + $0x260] sm:$0xff]
    %v175 = vld [vmem:[#allocation5 + $0x268] sm:$0xff]
    %v176 = vld [vmem:[#allocation5 + $0x270] sm:$0xff]
    %v177 = vld [vmem:[#allocation5 + $0x278] sm:$0xff]
    %v178 = vld [vmem:[#allocation5 + $0x280] sm:$0xff]
    %v179 = vld [vmem:[#allocation5 + $0x288] sm:$0xff]
    %v180 = vld [vmem:[#allocation5 + $0x290] sm:$0xff]
    %v181 = vld [vmem:[#allocation5 + $0x298] sm:$0xff]
    %v182 = vld [vmem:[#allocation5 + $0x2a0] sm:$0xff]
    %v183 = vld [vmem:[#allocation5 + $0x2a8] sm:$0xff]
    %v184 = vld [vmem:[#allocation5 + $0x2b0] sm:$0xff]
    %v185 = vld [vmem:[#allocation5 + $0x2b8] sm:$0xff]
    %v186 = vld [vmem:[#allocation5 + $0x2c0] sm:$0xff]
    %v187 = vld [vmem:[#allocation5 + $0x2c8] sm:$0xff]
    %v188 = vld [vmem:[#allocation5 + $0x2d0] sm:$0xff]
    %v189 = vld [vmem:[#allocation5 + $0x2d8] sm:$0xff]
    %v190 = vld [vmem:[#allocation5 + $0x2e0] sm:$0xff]
    %v191 = vld [vmem:[#allocation5 + $0x2e8] sm:$0xff]
    %v192 = vld [vmem:[#allocation5 + $0x2f0] sm:$0xff]
    %v193 = vld [vmem:[#allocation5 + $0x2f8] sm:$0xff]
    %v194 = vld [vmem:[#allocation5 + $0x300] sm:$0xff]
    %v195 = vld [vmem:[#allocation5 + $0x308] sm:$0xff]
    %v196 = vld [vmem:[#allocation5 + $0x310] sm:$0xff]
    %v197 = vld [vmem:[#allocation5 + $0x318] sm:$0xff]
    %v198 = vld [vmem:[#allocation5 + $0x320] sm:$0xff]
    %v199 = vld [vmem:[#allocation5 + $0x328] sm:$0xff]
    %v200 = vld [vmem:[#allocation5 + $0x330] sm:$0xff]
    %v201 = vld [vmem:[#allocation5 + $0x338] sm:$0xff]
    %v202 = vld [vmem:[#allocation5 + $0x340] sm:$0xff]
    %v203 = vld [vmem:[#allocation5 + $0x348] sm:$0xff]
    %v204 = vld [vmem:[#allocation5 + $0x350] sm:$0xff]
    %v205 = vld [vmem:[#allocation5 + $0x358] sm:$0xff]
    %v206 = vld [vmem:[#allocation5 + $0x360] sm:$0xff]
    %v207 = vld [vmem:[#allocation5 + $0x368] sm:$0xff]
    %v208 = vld [vmem:[#allocation5 + $0x370] sm:$0xff]
    %v209 = vld [vmem:[#allocation5 + $0x378] sm:$0xff]
    %v210 = vld [vmem:[#allocation5 + $0x380] sm:$0xff]
    %v211 = vld [vmem:[#allocation5 + $0x388] sm:$0xff]
    %v212 = vld [vmem:[#allocation5 + $0x390] sm:$0xff]
    %v213 = vld [vmem:[#allocation5 + $0x398] sm:$0xff]
    %v214 = vld [vmem:[#allocation5 + $0x3a0] sm:$0xff]
    %v215 = vld [vmem:[#allocation5 + $0x3a8] sm:$0xff]
    %v216 = vld [vmem:[#allocation5 + $0x3b0] sm:$0xff]
    %v217 = vld [vmem:[#allocation5 + $0x3b8] sm:$0xff]
    %v218 = vld [vmem:[#allocation5 + $0x3c0] sm:$0xff]
    %v219 = vld [vmem:[#allocation5 + $0x3c8] sm:$0xff]
    %v220 = vld [vmem:[#allocation5 + $0x3d0] sm:$0xff]
    %v221 = vld [vmem:[#allocation5 + $0x3d8] sm:$0xff]
    %v222 = vld [vmem:[#allocation5 + $0x3e0] sm:$0xff]
    %v223 = vld [vmem:[#allocation5 + $0x3e8] sm:$0xff]
    %v224 = vld [vmem:[#allocation5 + $0x3f0] sm:$0xff]
    %v225 = vld [vmem:[#allocation5 + $0x3f8] sm:$0xff]
    %v226 = vld [vmem:[#allocation5 + $0x400] sm:$0xff]
    %v227 = vld [vmem:[#allocation5 + $0x408] sm:$0xff]
    %v228 = vld [vmem:[#allocation5 + $0x410] sm:$0xff]
    %v229 = vld [vmem:[#allocation5 + $0x418] sm:$0xff]
    %v230 = vld [vmem:[#allocation5 + $0x420] sm:$0xff]
    %v231 = vld [vmem:[#allocation5 + $0x428] sm:$0xff]
    %v232 = vld [vmem:[#allocation5 + $0x430] sm:$0xff]
    %v233 = vld [vmem:[#allocation5 + $0x438] sm:$0xff]
    %v234 = vld [vmem:[#allocation5 + $0x440] sm:$0xff]
    %v235 = vld [vmem:[#allocation5 + $0x448] sm:$0xff]
    %v236 = vld [vmem:[#allocation5 + $0x450] sm:$0xff]
    %v237 = vld [vmem:[#allocation5 + $0x458] sm:$0xff]
    %v238 = vld [vmem:[#allocation5 + $0x460] sm:$0xff]
    %v239 = vld [vmem:[#allocation5 + $0x468] sm:$0xff]
    %v240 = vld [vmem:[#allocation5 + $0x470] sm:$0xff]
    %v241 = vld [vmem:[#allocation5 + $0x478] sm:$0xff]
    %v242 = vld [vmem:[#allocation5 + $0x480] sm:$0xff]
    %v243 = vld [vmem:[#allocation5 + $0x488] sm:$0xff]
    %v244 = vld [vmem:[#allocation5 + $0x490] sm:$0xff]
    %v245 = vld [vmem:[#allocation5 + $0x498] sm:$0xff]
    %v246 = vld [vmem:[#allocation5 + $0x4a0] sm:$0xff]
    %v247 = vld [vmem:[#allocation5 + $0x4a8] sm:$0xff]
    %v248 = vld [vmem:[#allocation5 + $0x4b0] sm:$0xff]
    %v249 = vld [vmem:[#allocation5 + $0x4b8] sm:$0xff]
    %v250 = vld [vmem:[#allocation5 + $0x4c0] sm:$0xff]
    %v251 = vld [vmem:[#allocation5 + $0x4c8] sm:$0xff]
    %v252 = vld [vmem:[#allocation5 + $0x4d0] sm:$0xff]
    %v253 = vld [vmem:[#allocation5 + $0x4d8] sm:$0xff]
    %v254 = vld [vmem:[#allocation5 + $0x4e0] sm:$0xff]
    %v255 = vld [vmem:[#allocation5 + $0x4e8] sm:$0xff]
    %v256 = vld [vmem:[#allocation5 + $0x4f0] sm:$0xff]
    %v257 = vld [vmem:[#allocation5 + $0x4f8] sm:$0xff]
    %v258 = vld [vmem:[#allocation5 + $0x500] sm:$0xff]
    %v259 = vld [vmem:[#allocation5 + $0x508] sm:$0xff]
    %v260 = vld [vmem:[#allocation5 + $0x510] sm:$0xff]
    %v261 = vld [vmem:[#allocation5 + $0x518] sm:$0xff]
    %v262 = vld [vmem:[#allocation5 + $0x520] sm:$0xff]
    %v263 = vld [vmem:[#allocation5 + $0x528] sm:$0xff]
    %v264 = vld [vmem:[#allocation5 + $0x530] sm:$0xff]
    %v265 = vld [vmem:[#allocation5 + $0x538] sm:$0xff]
    %v266 = vld [vmem:[#allocation5 + $0x540] sm:$0xff]
    %v267 = vld [vmem:[#allocation5 + $0x548] sm:$0xff]
    %v268 = vld [vmem:[#allocation5 + $0x550] sm:$0xff]
    %v269 = vld [vmem:[#allocation5 + $0x558] sm:$0xff]
    %v270 = vld [vmem:[#allocation5 + $0x560] sm:$0xff]
    %v271 = vld [vmem:[#allocation5 + $0x568] sm:$0xff]
    %v272 = vld [vmem:[#allocation5 + $0x570] sm:$0xff]
    %v273 = vld [vmem:[#allocation5 + $0x578] sm:$0xff]
    %v274 = vld [vmem:[#allocation5 + $0x580] sm:$0xff]
    %v275 = vld [vmem:[#allocation5 + $0x588] sm:$0xff]
    %v276 = vld [vmem:[#allocation5 + $0x590] sm:$0xff]
    %v277 = vld [vmem:[#allocation5 + $0x598] sm:$0xff]
    %v278 = vld [vmem:[#allocation5 + $0x5a0] sm:$0xff]
    %v279 = vld [vmem:[#allocation5 + $0x5a8] sm:$0xff]
    %v280 = vld [vmem:[#allocation5 + $0x5b0] sm:$0xff]
    %v281 = vld [vmem:[#allocation5 + $0x5b8] sm:$0xff]
    %v282 = vld [vmem:[#allocation5 + $0x5c0] sm:$0xff]
    %v283 = vld [vmem:[#allocation5 + $0x5c8] sm:$0xff]
    %v284 = vld [vmem:[#allocation5 + $0x5d0] sm:$0xff]
    %v285 = vld [vmem:[#allocation5 + $0x5d8] sm:$0xff]
    %v286 = vld [vmem:[#allocation5 + $0x5e0] sm:$0xff]
    %v287 = vld [vmem:[#allocation5 + $0x5e8] sm:$0xff]
    %v288 = vld [vmem:[#allocation5 + $0x5f0] sm:$0xff]
    %v289 = vld [vmem:[#allocation5 + $0x5f8] sm:$0xff]
    %v290 = vld [vmem:[#allocation5 + $0x600] sm:$0xff]
    %v291 = vld [vmem:[#allocation5 + $0x608] sm:$0xff]
    %v292 = vld [vmem:[#allocation5 + $0x610] sm:$0xff]
    %v293 = vld [vmem:[#allocation5 + $0x618] sm:$0xff]
    %v294 = vld [vmem:[#allocation5 + $0x620] sm:$0xff]
    %v295 = vld [vmem:[#allocation5 + $0x628] sm:$0xff]
    %v296 = vld [vmem:[#allocation5 + $0x630] sm:$0xff]
    %v297 = vld [vmem:[#allocation5 + $0x638] sm:$0xff]
    %v298 = vld [vmem:[#allocation5 + $0x640] sm:$0xff]
    %v299 = vld [vmem:[#allocation5 + $0x648] sm:$0xff]
    %v300 = vld [vmem:[#allocation5 + $0x650] sm:$0xff]
    %v301 = vld [vmem:[#allocation5 + $0x658] sm:$0xff]
    %v302 = vld [vmem:[#allocation5 + $0x660] sm:$0xff]
    %v303 = vld [vmem:[#allocation5 + $0x668] sm:$0xff]
    %v304 = vld [vmem:[#allocation5 + $0x670] sm:$0xff]
    %v305 = vld [vmem:[#allocation5 + $0x678] sm:$0xff]
    %v306 = vld [vmem:[#allocation5 + $0x680] sm:$0xff]
    %v307 = vld [vmem:[#allocation5 + $0x688] sm:$0xff]
    %v308 = vld [vmem:[#allocation5 + $0x690] sm:$0xff]
    %v309 = vld [vmem:[#allocation5 + $0x698] sm:$0xff]
    %v310 = vld [vmem:[#allocation5 + $0x6a0] sm:$0xff]
    %v311 = vld [vmem:[#allocation5 + $0x6a8] sm:$0xff]
    %v312 = vld [vmem:[#allocation5 + $0x6b0] sm:$0xff]
    %v313 = vld [vmem:[#allocation5 + $0x6b8] sm:$0xff]
    %v314 = vld [vmem:[#allocation5 + $0x6c0] sm:$0xff]
    %v315 = vld [vmem:[#allocation5 + $0x6c8] sm:$0xff]
    %v316 = vld [vmem:[#allocation5 + $0x6d0] sm:$0xff]
    %v317 = vld [vmem:[#allocation5 + $0x6d8] sm:$0xff]
    %v318 = vld [vmem:[#allocation5 + $0x6e0] sm:$0xff]
    %v319 = vld [vmem:[#allocation5 + $0x6e8] sm:$0xff]
    %v320 = vld [vmem:[#allocation5 + $0x6f0] sm:$0xff]
    %v321 = vld [vmem:[#allocation5 + $0x6f8] sm:$0xff]
    %v322 = vld [vmem:[#allocation5 + $0x700] sm:$0xff]
    %v323 = vld [vmem:[#allocation5 + $0x708] sm:$0xff]
    %v324 = vld [vmem:[#allocation5 + $0x710] sm:$0xff]
    %v325 = vld [vmem:[#allocation5 + $0x718] sm:$0xff]
    %v326 = vld [vmem:[#allocation5 + $0x720] sm:$0xff]
    %v327 = vld [vmem:[#allocation5 + $0x728] sm:$0xff]
    %v328 = vld [vmem:[#allocation5 + $0x730] sm:$0xff]
    %v329 = vld [vmem:[#allocation5 + $0x738] sm:$0xff]
    %v330 = vld [vmem:[#allocation5 + $0x740] sm:$0xff]
    %v331 = vld [vmem:[#allocation5 + $0x748] sm:$0xff]
    %v332 = vld [vmem:[#allocation5 + $0x750] sm:$0xff]
    %v333 = vld [vmem:[#allocation5 + $0x758] sm:$0xff]
    %v334 = vld [vmem:[#allocation5 + $0x760] sm:$0xff]
    %v335 = vld [vmem:[#allocation5 + $0x768] sm:$0xff]
    %v336 = vld [vmem:[#allocation5 + $0x770] sm:$0xff]
    %v337 = vld [vmem:[#allocation5 + $0x778] sm:$0xff]
    %v338 = vld [vmem:[#allocation5 + $0x780] sm:$0xff]
    %v339 = vld [vmem:[#allocation5 + $0x788] sm:$0xff]
    %v340 = vld [vmem:[#allocation5 + $0x790] sm:$0xff]
    %v341 = vld [vmem:[#allocation5 + $0x798] sm:$0xff]
    %v342 = vld [vmem:[#allocation5 + $0x7a0] sm:$0xff]
    %v343 = vld [vmem:[#allocation5 + $0x7a8] sm:$0xff]
    %v344 = vld [vmem:[#allocation5 + $0x7b0] sm:$0xff]
    %v345 = vld [vmem:[#allocation5 + $0x7b8] sm:$0xff]
    %v346 = vld [vmem:[#allocation5 + $0x7c0] sm:$0xff]
    %v347 = vld [vmem:[#allocation5 + $0x7c8] sm:$0xff]
    %v348 = vld [vmem:[#allocation5 + $0x7d0] sm:$0xff]
    %v349 = vld [vmem:[#allocation5 + $0x7d8] sm:$0xff]
    %v350 = vld [vmem:[#allocation5 + $0x7e0] sm:$0xff]
    %v351 = vld [vmem:[#allocation5 + $0x7e8] sm:$0xff]
    %v352 = vld [vmem:[#allocation5 + $0x7f0] sm:$0xff]
    %v353 = vld [vmem:[#allocation5 + $0x7f8] sm:$0xff]
    %v354 = vld [vmem:[#allocation7] sm:$0xff]
    %v356 = vlaneseq
    %v357 = vshrl.u32 %v356, 7
    %v358 = vsub.s32 0, %v357
    %v359 = vrot.slane %v354, %v358
    %v360 = vlaneseq
    %v361 = vshrl.u32 %v360, 7
    %v362 = vsub.s32 1, %v361
    %v363 = vrot.slane %v354, %v362
    %v364 = vlaneseq
    %v365 = vshrl.u32 %v364, 7
    %v366 = vsub.s32 2, %v365
    %v367 = vrot.slane %v354, %v366
    %v368 = vlaneseq
    %v369 = vshrl.u32 %v368, 7
    %v370 = vsub.s32 3, %v369
    %v371 = vrot.slane %v354, %v370
    %v372 = vlaneseq
    %v373 = vshrl.u32 %v372, 7
    %v374 = vsub.s32 4, %v373
    %v375 = vrot.slane %v354, %v374
    %v376 = vlaneseq
    %v377 = vshrl.u32 %v376, 7
    %v378 = vsub.s32 5, %v377
    %v379 = vrot.slane %v354, %v378
    %v380 = vlaneseq
    %v381 = vshrl.u32 %v380, 7
    %v382 = vsub.s32 6, %v381
    %v383 = vrot.slane %v354, %v382
    %v384 = vlaneseq
    %v385 = vshrl.u32 %v384, 7
    %v386 = vsub.s32 7, %v385
    %v387 = vrot.slane %v354, %v386
    %v400 = vunpack.c.l.b16 %v94
    %v401 = vunpack.c.h.b16 %v94
    %v402 = vunpack.c.l.b16 %v95
    %v403 = vunpack.c.h.b16 %v95
    %v404 = vunpack.c.l.b16 %v96
    %v405 = vunpack.c.h.b16 %v96
    %v406 = vunpack.c.l.b16 %v97
    %v407 = vunpack.c.h.b16 %v97
    %v408 = vpack.c.b16 %v404, %v400
    %v409 = vpack.c.b16 %v405, %v401
    %v410 = vpack.c.b16 %v406, %v402
    %v411 = vpack.c.b16 %v407, %v403
    %v672 = vunpack.c.l.b16 %v98
    %v673 = vunpack.c.h.b16 %v98
    %v674 = vunpack.c.l.b16 %v99
    %v675 = vunpack.c.h.b16 %v99
    %v676 = vunpack.c.l.b16 %v100
    %v677 = vunpack.c.h.b16 %v100
    %v678 = vunpack.c.l.b16 %v101
    %v679 = vunpack.c.h.b16 %v101
    %v680 = vunpack.c.l.b16 %v102
    %v681 = vunpack.c.h.b16 %v102
    %v682 = vunpack.c.l.b16 %v103
    %v683 = vunpack.c.h.b16 %v103
    %v684 = vunpack.c.l.b16 %v104
    %v685 = vunpack.c.h.b16 %v104
    %v686 = vunpack.c.l.b16 %v105
    %v687 = vunpack.c.h.b16 %v105
    %v688 = vunpack.c.l.b16 %v106
    %v689 = vunpack.c.h.b16 %v106
    %v690 = vunpack.c.l.b16 %v107
    %v691 = vunpack.c.h.b16 %v107
    %v692 = vunpack.c.l.b16 %v108
    %v693 = vunpack.c.h.b16 %v108
    %v694 = vunpack.c.l.b16 %v109
    %v695 = vunpack.c.h.b16 %v109
    %v696 = vunpack.c.l.b16 %v110
    %v697 = vunpack.c.h.b16 %v110
    %v698 = vunpack.c.l.b16 %v111
    %v699 = vunpack.c.h.b16 %v111
    %v700 = vunpack.c.l.b16 %v112
    %v701 = vunpack.c.h.b16 %v112
    %v702 = vunpack.c.l.b16 %v113
    %v703 = vunpack.c.h.b16 %v113
    %v704 = vunpack.c.l.b16 %v114
    %v705 = vunpack.c.h.b16 %v114
    %v706 = vunpack.c.l.b16 %v115
    %v707 = vunpack.c.h.b16 %v115
    %v708 = vunpack.c.l.b16 %v116
    %v709 = vunpack.c.h.b16 %v116
    %v710 = vunpack.c.l.b16 %v117
    %v711 = vunpack.c.h.b16 %v117
    %v712 = vunpack.c.l.b16 %v118
    %v713 = vunpack.c.h.b16 %v118
    %v714 = vunpack.c.l.b16 %v119
    %v715 = vunpack.c.h.b16 %v119
    %v716 = vunpack.c.l.b16 %v120
    %v717 = vunpack.c.h.b16 %v120
    %v718 = vunpack.c.l.b16 %v121
    %v719 = vunpack.c.h.b16 %v121
    %v720 = vunpack.c.l.b16 %v122
    %v721 = vunpack.c.h.b16 %v122
    %v722 = vunpack.c.l.b16 %v123
    %v723 = vunpack.c.h.b16 %v123
    %v724 = vunpack.c.l.b16 %v124
    %v725 = vunpack.c.h.b16 %v124
    %v726 = vunpack.c.l.b16 %v125
    %v727 = vunpack.c.h.b16 %v125
    %v728 = vunpack.c.l.b16 %v126
    %v729 = vunpack.c.h.b16 %v126
    %v730 = vunpack.c.l.b16 %v127
    %v731 = vunpack.c.h.b16 %v127
    %v732 = vunpack.c.l.b16 %v128
    %v733 = vunpack.c.h.b16 %v128
    %v734 = vunpack.c.l.b16 %v129
    %v735 = vunpack.c.h.b16 %v129
    %v736 = vunpack.c.l.b16 %v130
    %v737 = vunpack.c.h.b16 %v130
    %v738 = vunpack.c.l.b16 %v131
    %v739 = vunpack.c.h.b16 %v131
    %v740 = vunpack.c.l.b16 %v132
    %v741 = vunpack.c.h.b16 %v132
    %v742 = vunpack.c.l.b16 %v133
    %v743 = vunpack.c.h.b16 %v133
    %v744 = vunpack.c.l.b16 %v134
    %v745 = vunpack.c.h.b16 %v134
    %v746 = vunpack.c.l.b16 %v135
    %v747 = vunpack.c.h.b16 %v135
    %v748 = vunpack.c.l.b16 %v136
    %v749 = vunpack.c.h.b16 %v136
    %v750 = vunpack.c.l.b16 %v137
    %v751 = vunpack.c.h.b16 %v137
    %v752 = vunpack.c.l.b16 %v138
    %v753 = vunpack.c.h.b16 %v138
    %v754 = vunpack.c.l.b16 %v139
    %v755 = vunpack.c.h.b16 %v139
    %v756 = vunpack.c.l.b16 %v140
    %v757 = vunpack.c.h.b16 %v140
    %v758 = vunpack.c.l.b16 %v141
    %v759 = vunpack.c.h.b16 %v141
    %v760 = vunpack.c.l.b16 %v142
    %v761 = vunpack.c.h.b16 %v142
    %v762 = vunpack.c.l.b16 %v143
    %v763 = vunpack.c.h.b16 %v143
    %v764 = vunpack.c.l.b16 %v144
    %v765 = vunpack.c.h.b16 %v144
    %v766 = vunpack.c.l.b16 %v145
    %v767 = vunpack.c.h.b16 %v145
    %v768 = vunpack.c.l.b16 %v146
    %v769 = vunpack.c.h.b16 %v146
    %v770 = vunpack.c.l.b16 %v147
    %v771 = vunpack.c.h.b16 %v147
    %v772 = vunpack.c.l.b16 %v148
    %v773 = vunpack.c.h.b16 %v148
    %v774 = vunpack.c.l.b16 %v149
    %v775 = vunpack.c.h.b16 %v149
    %v776 = vunpack.c.l.b16 %v150
    %v777 = vunpack.c.h.b16 %v150
    %v778 = vunpack.c.l.b16 %v151
    %v779 = vunpack.c.h.b16 %v151
    %v780 = vunpack.c.l.b16 %v152
    %v781 = vunpack.c.h.b16 %v152
    %v782 = vunpack.c.l.b16 %v153
    %v783 = vunpack.c.h.b16 %v153
    %v784 = vunpack.c.l.b16 %v154
    %v785 = vunpack.c.h.b16 %v154
    %v786 = vunpack.c.l.b16 %v155
    %v787 = vunpack.c.h.b16 %v155
    %v788 = vunpack.c.l.b16 %v156
    %v789 = vunpack.c.h.b16 %v156
    %v790 = vunpack.c.l.b16 %v157
    %v791 = vunpack.c.h.b16 %v157
    %v792 = vunpack.c.l.b16 %v158
    %v793 = vunpack.c.h.b16 %v158
    %v794 = vunpack.c.l.b16 %v159
    %v795 = vunpack.c.h.b16 %v159
    %v796 = vunpack.c.l.b16 %v160
    %v797 = vunpack.c.h.b16 %v160
    %v798 = vunpack.c.l.b16 %v161
    %v799 = vunpack.c.h.b16 %v161
    %v800 = vunpack.c.l.b16 %v162
    %v801 = vunpack.c.h.b16 %v162
    %v802 = vunpack.c.l.b16 %v163
    %v803 = vunpack.c.h.b16 %v163
    %v804 = vunpack.c.l.b16 %v164
    %v805 = vunpack.c.h.b16 %v164
    %v806 = vunpack.c.l.b16 %v165
    %v807 = vunpack.c.h.b16 %v165
    %v808 = vunpack.c.l.b16 %v166
    %v809 = vunpack.c.h.b16 %v166
    %v810 = vunpack.c.l.b16 %v167
    %v811 = vunpack.c.h.b16 %v167
    %v812 = vunpack.c.l.b16 %v168
    %v813 = vunpack.c.h.b16 %v168
    %v814 = vunpack.c.l.b16 %v169
    %v815 = vunpack.c.h.b16 %v169
    %v816 = vunpack.c.l.b16 %v170
    %v817 = vunpack.c.h.b16 %v170
    %v818 = vunpack.c.l.b16 %v171
    %v819 = vunpack.c.h.b16 %v171
    %v820 = vunpack.c.l.b16 %v172
    %v821 = vunpack.c.h.b16 %v172
    %v822 = vunpack.c.l.b16 %v173
    %v823 = vunpack.c.h.b16 %v173
    %v824 = vunpack.c.l.b16 %v174
    %v825 = vunpack.c.h.b16 %v174
    %v826 = vunpack.c.l.b16 %v175
    %v827 = vunpack.c.h.b16 %v175
    %v828 = vunpack.c.l.b16 %v176
    %v829 = vunpack.c.h.b16 %v176
    %v830 = vunpack.c.l.b16 %v177
    %v831 = vunpack.c.h.b16 %v177
    %v832 = vunpack.c.l.b16 %v178
    %v833 = vunpack.c.h.b16 %v178
    %v834 = vunpack.c.l.b16 %v179
    %v835 = vunpack.c.h.b16 %v179
    %v836 = vunpack.c.l.b16 %v180
    %v837 = vunpack.c.h.b16 %v180
    %v838 = vunpack.c.l.b16 %v181
    %v839 = vunpack.c.h.b16 %v181
    %v840 = vunpack.c.l.b16 %v182
    %v841 = vunpack.c.h.b16 %v182
    %v842 = vunpack.c.l.b16 %v183
    %v843 = vunpack.c.h.b16 %v183
    %v844 = vunpack.c.l.b16 %v184
    %v845 = vunpack.c.h.b16 %v184
    %v846 = vunpack.c.l.b16 %v185
    %v847 = vunpack.c.h.b16 %v185
    %v848 = vunpack.c.l.b16 %v186
    %v849 = vunpack.c.h.b16 %v186
    %v850 = vunpack.c.l.b16 %v187
    %v851 = vunpack.c.h.b16 %v187
    %v852 = vunpack.c.l.b16 %v188
    %v853 = vunpack.c.h.b16 %v188
    %v854 = vunpack.c.l.b16 %v189
    %v855 = vunpack.c.h.b16 %v189
    %v856 = vunpack.c.l.b16 %v190
    %v857 = vunpack.c.h.b16 %v190
    %v858 = vunpack.c.l.b16 %v191
    %v859 = vunpack.c.h.b16 %v191
    %v860 = vunpack.c.l.b16 %v192
    %v861 = vunpack.c.h.b16 %v192
    %v862 = vunpack.c.l.b16 %v193
    %v863 = vunpack.c.h.b16 %v193
    %v864 = vunpack.c.l.b16 %v194
    %v865 = vunpack.c.h.b16 %v194
    %v866 = vunpack.c.l.b16 %v195
    %v867 = vunpack.c.h.b16 %v195
    %v868 = vunpack.c.l.b16 %v196
    %v869 = vunpack.c.h.b16 %v196
    %v870 = vunpack.c.l.b16 %v197
    %v871 = vunpack.c.h.b16 %v197
    %v872 = vunpack.c.l.b16 %v198
    %v873 = vunpack.c.h.b16 %v198
    %v874 = vunpack.c.l.b16 %v199
    %v875 = vunpack.c.h.b16 %v199
    %v876 = vunpack.c.l.b16 %v200
    %v877 = vunpack.c.h.b16 %v200
    %v878 = vunpack.c.l.b16 %v201
    %v879 = vunpack.c.h.b16 %v201
    %v880 = vunpack.c.l.b16 %v202
    %v881 = vunpack.c.h.b16 %v202
    %v882 = vunpack.c.l.b16 %v203
    %v883 = vunpack.c.h.b16 %v203
    %v884 = vunpack.c.l.b16 %v204
    %v885 = vunpack.c.h.b16 %v204
    %v886 = vunpack.c.l.b16 %v205
    %v887 = vunpack.c.h.b16 %v205
    %v888 = vunpack.c.l.b16 %v206
    %v889 = vunpack.c.h.b16 %v206
    %v890 = vunpack.c.l.b16 %v207
    %v891 = vunpack.c.h.b16 %v207
    %v892 = vunpack.c.l.b16 %v208
    %v893 = vunpack.c.h.b16 %v208
    %v894 = vunpack.c.l.b16 %v209
    %v895 = vunpack.c.h.b16 %v209
    %v896 = vunpack.c.l.b16 %v210
    %v897 = vunpack.c.h.b16 %v210
    %v898 = vunpack.c.l.b16 %v211
    %v899 = vunpack.c.h.b16 %v211
    %v900 = vunpack.c.l.b16 %v212
    %v901 = vunpack.c.h.b16 %v212
    %v902 = vunpack.c.l.b16 %v213
    %v903 = vunpack.c.h.b16 %v213
    %v904 = vunpack.c.l.b16 %v214
    %v905 = vunpack.c.h.b16 %v214
    %v906 = vunpack.c.l.b16 %v215
    %v907 = vunpack.c.h.b16 %v215
    %v908 = vunpack.c.l.b16 %v216
    %v909 = vunpack.c.h.b16 %v216
    %v910 = vunpack.c.l.b16 %v217
    %v911 = vunpack.c.h.b16 %v217
    %v912 = vunpack.c.l.b16 %v218
    %v913 = vunpack.c.h.b16 %v218
    %v914 = vunpack.c.l.b16 %v219
    %v915 = vunpack.c.h.b16 %v219
    %v916 = vunpack.c.l.b16 %v220
    %v917 = vunpack.c.h.b16 %v220
    %v918 = vunpack.c.l.b16 %v221
    %v919 = vunpack.c.h.b16 %v221
    %v920 = vunpack.c.l.b16 %v222
    %v921 = vunpack.c.h.b16 %v222
    %v922 = vunpack.c.l.b16 %v223
    %v923 = vunpack.c.h.b16 %v223
    %v924 = vunpack.c.l.b16 %v224
    %v925 = vunpack.c.h.b16 %v224
    %v926 = vunpack.c.l.b16 %v225
    %v927 = vunpack.c.h.b16 %v225
    %v928 = vunpack.c.l.b16 %v226
    %v929 = vunpack.c.h.b16 %v226
    %v930 = vunpack.c.l.b16 %v227
    %v931 = vunpack.c.h.b16 %v227
    %v932 = vunpack.c.l.b16 %v228
    %v933 = vunpack.c.h.b16 %v228
    %v934 = vunpack.c.l.b16 %v229
    %v935 = vunpack.c.h.b16 %v229
    %v936 = vunpack.c.l.b16 %v230
    %v937 = vunpack.c.h.b16 %v230
    %v938 = vunpack.c.l.b16 %v231
    %v939 = vunpack.c.h.b16 %v231
    %v940 = vunpack.c.l.b16 %v232
    %v941 = vunpack.c.h.b16 %v232
    %v942 = vunpack.c.l.b16 %v233
    %v943 = vunpack.c.h.b16 %v233
    %v944 = vunpack.c.l.b16 %v234
    %v945 = vunpack.c.h.b16 %v234
    %v946 = vunpack.c.l.b16 %v235
    %v947 = vunpack.c.h.b16 %v235
    %v948 = vunpack.c.l.b16 %v236
    %v949 = vunpack.c.h.b16 %v236
    %v950 = vunpack.c.l.b16 %v237
    %v951 = vunpack.c.h.b16 %v237
    %v952 = vunpack.c.l.b16 %v238
    %v953 = vunpack.c.h.b16 %v238
    %v954 = vunpack.c.l.b16 %v239
    %v955 = vunpack.c.h.b16 %v239
    %v956 = vunpack.c.l.b16 %v240
    %v957 = vunpack.c.h.b16 %v240
    %v958 = vunpack.c.l.b16 %v241
    %v959 = vunpack.c.h.b16 %v241
    %v960 = vunpack.c.l.b16 %v242
    %v961 = vunpack.c.h.b16 %v242
    %v962 = vunpack.c.l.b16 %v243
    %v963 = vunpack.c.h.b16 %v243
    %v964 = vunpack.c.l.b16 %v244
    %v965 = vunpack.c.h.b16 %v244
    %v966 = vunpack.c.l.b16 %v245
    %v967 = vunpack.c.h.b16 %v245
    %v968 = vunpack.c.l.b16 %v246
    %v969 = vunpack.c.h.b16 %v246
    %v970 = vunpack.c.l.b16 %v247
    %v971 = vunpack.c.h.b16 %v247
    %v972 = vunpack.c.l.b16 %v248
    %v973 = vunpack.c.h.b16 %v248
    %v974 = vunpack.c.l.b16 %v249
    %v975 = vunpack.c.h.b16 %v249
    %v976 = vunpack.c.l.b16 %v250
    %v977 = vunpack.c.h.b16 %v250
    %v978 = vunpack.c.l.b16 %v251
    %v979 = vunpack.c.h.b16 %v251
    %v980 = vunpack.c.l.b16 %v252
    %v981 = vunpack.c.h.b16 %v252
    %v982 = vunpack.c.l.b16 %v253
    %v983 = vunpack.c.h.b16 %v253
    %v984 = vunpack.c.l.b16 %v254
    %v985 = vunpack.c.h.b16 %v254
    %v986 = vunpack.c.l.b16 %v255
    %v987 = vunpack.c.h.b16 %v255
    %v988 = vunpack.c.l.b16 %v256
    %v989 = vunpack.c.h.b16 %v256
    %v990 = vunpack.c.l.b16 %v257
    %v991 = vunpack.c.h.b16 %v257
    %v992 = vunpack.c.l.b16 %v258
    %v993 = vunpack.c.h.b16 %v258
    %v994 = vunpack.c.l.b16 %v259
    %v995 = vunpack.c.h.b16 %v259
    %v996 = vunpack.c.l.b16 %v260
    %v997 = vunpack.c.h.b16 %v260
    %v998 = vunpack.c.l.b16 %v261
    %v999 = vunpack.c.h.b16 %v261
    %v1000 = vunpack.c.l.b16 %v262
    %v1001 = vunpack.c.h.b16 %v262
    %v1002 = vunpack.c.l.b16 %v263
    %v1003 = vunpack.c.h.b16 %v263
    %v1004 = vunpack.c.l.b16 %v264
    %v1005 = vunpack.c.h.b16 %v264
    %v1006 = vunpack.c.l.b16 %v265
    %v1007 = vunpack.c.h.b16 %v265
    %v1008 = vunpack.c.l.b16 %v266
    %v1009 = vunpack.c.h.b16 %v266
    %v1010 = vunpack.c.l.b16 %v267
    %v1011 = vunpack.c.h.b16 %v267
    %v1012 = vunpack.c.l.b16 %v268
    %v1013 = vunpack.c.h.b16 %v268
    %v1014 = vunpack.c.l.b16 %v269
    %v1015 = vunpack.c.h.b16 %v269
    %v1016 = vunpack.c.l.b16 %v270
    %v1017 = vunpack.c.h.b16 %v270
    %v1018 = vunpack.c.l.b16 %v271
    %v1019 = vunpack.c.h.b16 %v271
    %v1020 = vunpack.c.l.b16 %v272
    %v1021 = vunpack.c.h.b16 %v272
    %v1022 = vunpack.c.l.b16 %v273
    %v1023 = vunpack.c.h.b16 %v273
    %v1024 = vunpack.c.l.b16 %v274
    %v1025 = vunpack.c.h.b16 %v274
    %v1026 = vunpack.c.l.b16 %v275
    %v1027 = vunpack.c.h.b16 %v275
    %v1028 = vunpack.c.l.b16 %v276
    %v1029 = vunpack.c.h.b16 %v276
    %v1030 = vunpack.c.l.b16 %v277
    %v1031 = vunpack.c.h.b16 %v277
    %v1032 = vunpack.c.l.b16 %v278
    %v1033 = vunpack.c.h.b16 %v278
    %v1034 = vunpack.c.l.b16 %v279
    %v1035 = vunpack.c.h.b16 %v279
    %v1036 = vunpack.c.l.b16 %v280
    %v1037 = vunpack.c.h.b16 %v280
    %v1038 = vunpack.c.l.b16 %v281
    %v1039 = vunpack.c.h.b16 %v281
    %v1040 = vunpack.c.l.b16 %v282
    %v1041 = vunpack.c.h.b16 %v282
    %v1042 = vunpack.c.l.b16 %v283
    %v1043 = vunpack.c.h.b16 %v283
    %v1044 = vunpack.c.l.b16 %v284
    %v1045 = vunpack.c.h.b16 %v284
    %v1046 = vunpack.c.l.b16 %v285
    %v1047 = vunpack.c.h.b16 %v285
    %v1048 = vunpack.c.l.b16 %v286
    %v1049 = vunpack.c.h.b16 %v286
    %v1050 = vunpack.c.l.b16 %v287
    %v1051 = vunpack.c.h.b16 %v287
    %v1052 = vunpack.c.l.b16 %v288
    %v1053 = vunpack.c.h.b16 %v288
    %v1054 = vunpack.c.l.b16 %v289
    %v1055 = vunpack.c.h.b16 %v289
    %v1056 = vunpack.c.l.b16 %v290
    %v1057 = vunpack.c.h.b16 %v290
    %v1058 = vunpack.c.l.b16 %v291
    %v1059 = vunpack.c.h.b16 %v291
    %v1060 = vunpack.c.l.b16 %v292
    %v1061 = vunpack.c.h.b16 %v292
    %v1062 = vunpack.c.l.b16 %v293
    %v1063 = vunpack.c.h.b16 %v293
    %v1064 = vunpack.c.l.b16 %v294
    %v1065 = vunpack.c.h.b16 %v294
    %v1066 = vunpack.c.l.b16 %v295
    %v1067 = vunpack.c.h.b16 %v295
    %v1068 = vunpack.c.l.b16 %v296
    %v1069 = vunpack.c.h.b16 %v296
    %v1070 = vunpack.c.l.b16 %v297
    %v1071 = vunpack.c.h.b16 %v297
    %v1072 = vunpack.c.l.b16 %v298
    %v1073 = vunpack.c.h.b16 %v298
    %v1074 = vunpack.c.l.b16 %v299
    %v1075 = vunpack.c.h.b16 %v299
    %v1076 = vunpack.c.l.b16 %v300
    %v1077 = vunpack.c.h.b16 %v300
    %v1078 = vunpack.c.l.b16 %v301
    %v1079 = vunpack.c.h.b16 %v301
    %v1080 = vunpack.c.l.b16 %v302
    %v1081 = vunpack.c.h.b16 %v302
    %v1082 = vunpack.c.l.b16 %v303
    %v1083 = vunpack.c.h.b16 %v303
    %v1084 = vunpack.c.l.b16 %v304
    %v1085 = vunpack.c.h.b16 %v304
    %v1086 = vunpack.c.l.b16 %v305
    %v1087 = vunpack.c.h.b16 %v305
    %v1088 = vunpack.c.l.b16 %v306
    %v1089 = vunpack.c.h.b16 %v306
    %v1090 = vunpack.c.l.b16 %v307
    %v1091 = vunpack.c.h.b16 %v307
    %v1092 = vunpack.c.l.b16 %v308
    %v1093 = vunpack.c.h.b16 %v308
    %v1094 = vunpack.c.l.b16 %v309
    %v1095 = vunpack.c.h.b16 %v309
    %v1096 = vunpack.c.l.b16 %v310
    %v1097 = vunpack.c.h.b16 %v310
    %v1098 = vunpack.c.l.b16 %v311
    %v1099 = vunpack.c.h.b16 %v311
    %v1100 = vunpack.c.l.b16 %v312
    %v1101 = vunpack.c.h.b16 %v312
    %v1102 = vunpack.c.l.b16 %v313
    %v1103 = vunpack.c.h.b16 %v313
    %v1104 = vunpack.c.l.b16 %v314
    %v1105 = vunpack.c.h.b16 %v314
    %v1106 = vunpack.c.l.b16 %v315
    %v1107 = vunpack.c.h.b16 %v315
    %v1108 = vunpack.c.l.b16 %v316
    %v1109 = vunpack.c.h.b16 %v316
    %v1110 = vunpack.c.l.b16 %v317
    %v1111 = vunpack.c.h.b16 %v317
    %v1112 = vunpack.c.l.b16 %v318
    %v1113 = vunpack.c.h.b16 %v318
    %v1114 = vunpack.c.l.b16 %v319
    %v1115 = vunpack.c.h.b16 %v319
    %v1116 = vunpack.c.l.b16 %v320
    %v1117 = vunpack.c.h.b16 %v320
    %v1118 = vunpack.c.l.b16 %v321
    %v1119 = vunpack.c.h.b16 %v321
    %v1120 = vunpack.c.l.b16 %v322
    %v1121 = vunpack.c.h.b16 %v322
    %v1122 = vunpack.c.l.b16 %v323
    %v1123 = vunpack.c.h.b16 %v323
    %v1124 = vunpack.c.l.b16 %v324
    %v1125 = vunpack.c.h.b16 %v324
    %v1126 = vunpack.c.l.b16 %v325
    %v1127 = vunpack.c.h.b16 %v325
    %v1128 = vunpack.c.l.b16 %v326
    %v1129 = vunpack.c.h.b16 %v326
    %v1130 = vunpack.c.l.b16 %v327
    %v1131 = vunpack.c.h.b16 %v327
    %v1132 = vunpack.c.l.b16 %v328
    %v1133 = vunpack.c.h.b16 %v328
    %v1134 = vunpack.c.l.b16 %v329
    %v1135 = vunpack.c.h.b16 %v329
    %v1136 = vunpack.c.l.b16 %v330
    %v1137 = vunpack.c.h.b16 %v330
    %v1138 = vunpack.c.l.b16 %v331
    %v1139 = vunpack.c.h.b16 %v331
    %v1140 = vunpack.c.l.b16 %v332
    %v1141 = vunpack.c.h.b16 %v332
    %v1142 = vunpack.c.l.b16 %v333
    %v1143 = vunpack.c.h.b16 %v333
    %v1144 = vunpack.c.l.b16 %v334
    %v1145 = vunpack.c.h.b16 %v334
    %v1146 = vunpack.c.l.b16 %v335
    %v1147 = vunpack.c.h.b16 %v335
    %v1148 = vunpack.c.l.b16 %v336
    %v1149 = vunpack.c.h.b16 %v336
    %v1150 = vunpack.c.l.b16 %v337
    %v1151 = vunpack.c.h.b16 %v337
    %v1152 = vunpack.c.l.b16 %v338
    %v1153 = vunpack.c.h.b16 %v338
    %v1154 = vunpack.c.l.b16 %v339
    %v1155 = vunpack.c.h.b16 %v339
    %v1156 = vunpack.c.l.b16 %v340
    %v1157 = vunpack.c.h.b16 %v340
    %v1158 = vunpack.c.l.b16 %v341
    %v1159 = vunpack.c.h.b16 %v341
    %v1160 = vunpack.c.l.b16 %v342
    %v1161 = vunpack.c.h.b16 %v342
    %v1162 = vunpack.c.l.b16 %v343
    %v1163 = vunpack.c.h.b16 %v343
    %v1164 = vunpack.c.l.b16 %v344
    %v1165 = vunpack.c.h.b16 %v344
    %v1166 = vunpack.c.l.b16 %v345
    %v1167 = vunpack.c.h.b16 %v345
    %v1168 = vunpack.c.l.b16 %v346
    %v1169 = vunpack.c.h.b16 %v346
    %v1170 = vunpack.c.l.b16 %v347
    %v1171 = vunpack.c.h.b16 %v347
    %v1172 = vunpack.c.l.b16 %v348
    %v1173 = vunpack.c.h.b16 %v348
    %v1174 = vunpack.c.l.b16 %v349
    %v1175 = vunpack.c.h.b16 %v349
    %v1176 = vunpack.c.l.b16 %v350
    %v1177 = vunpack.c.h.b16 %v350
    %v1178 = vunpack.c.l.b16 %v351
    %v1179 = vunpack.c.h.b16 %v351
    %v1180 = vunpack.c.l.b16 %v352
    %v1181 = vunpack.c.h.b16 %v352
    %v1182 = vunpack.c.l.b16 %v353
    %v1183 = vunpack.c.h.b16 %v353
    %v1184 = vpack.c.b16 %v680, %v672
    %v1185 = vpack.c.b16 %v681, %v673
    %v1186 = vpack.c.b16 %v682, %v674
    %v1187 = vpack.c.b16 %v683, %v675
    %v1188 = vpack.c.b16 %v684, %v676
    %v1189 = vpack.c.b16 %v685, %v677
    %v1190 = vpack.c.b16 %v686, %v678
    %v1191 = vpack.c.b16 %v687, %v679
    %v1192 = vpack.c.b16 %v696, %v688
    %v1193 = vpack.c.b16 %v697, %v689
    %v1194 = vpack.c.b16 %v698, %v690
    %v1195 = vpack.c.b16 %v699, %v691
    %v1196 = vpack.c.b16 %v700, %v692
    %v1197 = vpack.c.b16 %v701, %v693
    %v1198 = vpack.c.b16 %v702, %v694
    %v1199 = vpack.c.b16 %v703, %v695
    %v1200 = vpack.c.b16 %v712, %v704
    %v1201 = vpack.c.b16 %v713, %v705
    %v1202 = vpack.c.b16 %v714, %v706
    %v1203 = vpack.c.b16 %v715, %v707
    %v1204 = vpack.c.b16 %v716, %v708
    %v1205 = vpack.c.b16 %v717, %v709
    %v1206 = vpack.c.b16 %v718, %v710
    %v1207 = vpack.c.b16 %v719, %v711
    %v1208 = vpack.c.b16 %v728, %v720
    %v1209 = vpack.c.b16 %v729, %v721
    %v1210 = vpack.c.b16 %v730, %v722
    %v1211 = vpack.c.b16 %v731, %v723
    %v1212 = vpack.c.b16 %v732, %v724
    %v1213 = vpack.c.b16 %v733, %v725
    %v1214 = vpack.c.b16 %v734, %v726
    %v1215 = vpack.c.b16 %v735, %v727
    %v1216 = vpack.c.b16 %v744, %v736
    %v1217 = vpack.c.b16 %v745, %v737
    %v1218 = vpack.c.b16 %v746, %v738
    %v1219 = vpack.c.b16 %v747, %v739
    %v1220 = vpack.c.b16 %v748, %v740
    %v1221 = vpack.c.b16 %v749, %v741
    %v1222 = vpack.c.b16 %v750, %v742
    %v1223 = vpack.c.b16 %v751, %v743
    %v1224 = vpack.c.b16 %v760, %v752
    %v1225 = vpack.c.b16 %v761, %v753
    %v1226 = vpack.c.b16 %v762, %v754
    %v1227 = vpack.c.b16 %v763, %v755
    %v1228 = vpack.c.b16 %v764, %v756
    %v1229 = vpack.c.b16 %v765, %v757
    %v1230 = vpack.c.b16 %v766, %v758
    %v1231 = vpack.c.b16 %v767, %v759
    %v1232 = vpack.c.b16 %v776, %v768
    %v1233 = vpack.c.b16 %v777, %v769
    %v1234 = vpack.c.b16 %v778, %v770
    %v1235 = vpack.c.b16 %v779, %v771
    %v1236 = vpack.c.b16 %v780, %v772
    %v1237 = vpack.c.b16 %v781, %v773
    %v1238 = vpack.c.b16 %v782, %v774
    %v1239 = vpack.c.b16 %v783, %v775
    %v1240 = vpack.c.b16 %v792, %v784
    %v1241 = vpack.c.b16 %v793, %v785
    %v1242 = vpack.c.b16 %v794, %v786
    %v1243 = vpack.c.b16 %v795, %v787
    %v1244 = vpack.c.b16 %v796, %v788
    %v1245 = vpack.c.b16 %v797, %v789
    %v1246 = vpack.c.b16 %v798, %v790
    %v1247 = vpack.c.b16 %v799, %v791
    %v1248 = vpack.c.b16 %v808, %v800
    %v1249 = vpack.c.b16 %v809, %v801
    %v1250 = vpack.c.b16 %v810, %v802
    %v1251 = vpack.c.b16 %v811, %v803
    %v1252 = vpack.c.b16 %v812, %v804
    %v1253 = vpack.c.b16 %v813, %v805
    %v1254 = vpack.c.b16 %v814, %v806
    %v1255 = vpack.c.b16 %v815, %v807
    %v1256 = vpack.c.b16 %v824, %v816
    %v1257 = vpack.c.b16 %v825, %v817
    %v1258 = vpack.c.b16 %v826, %v818
    %v1259 = vpack.c.b16 %v827, %v819
    %v1260 = vpack.c.b16 %v828, %v820
    %v1261 = vpack.c.b16 %v829, %v821
    %v1262 = vpack.c.b16 %v830, %v822
    %v1263 = vpack.c.b16 %v831, %v823
    %v1264 = vpack.c.b16 %v840, %v832
    %v1265 = vpack.c.b16 %v841, %v833
    %v1266 = vpack.c.b16 %v842, %v834
    %v1267 = vpack.c.b16 %v843, %v835
    %v1268 = vpack.c.b16 %v844, %v836
    %v1269 = vpack.c.b16 %v845, %v837
    %v1270 = vpack.c.b16 %v846, %v838
    %v1271 = vpack.c.b16 %v847, %v839
    %v1272 = vpack.c.b16 %v856, %v848
    %v1273 = vpack.c.b16 %v857, %v849
    %v1274 = vpack.c.b16 %v858, %v850
    %v1275 = vpack.c.b16 %v859, %v851
    %v1276 = vpack.c.b16 %v860, %v852
    %v1277 = vpack.c.b16 %v861, %v853
    %v1278 = vpack.c.b16 %v862, %v854
    %v1279 = vpack.c.b16 %v863, %v855
    %v1280 = vpack.c.b16 %v872, %v864
    %v1281 = vpack.c.b16 %v873, %v865
    %v1282 = vpack.c.b16 %v874, %v866
    %v1283 = vpack.c.b16 %v875, %v867
    %v1284 = vpack.c.b16 %v876, %v868
    %v1285 = vpack.c.b16 %v877, %v869
    %v1286 = vpack.c.b16 %v878, %v870
    %v1287 = vpack.c.b16 %v879, %v871
    %v1288 = vpack.c.b16 %v888, %v880
    %v1289 = vpack.c.b16 %v889, %v881
    %v1290 = vpack.c.b16 %v890, %v882
    %v1291 = vpack.c.b16 %v891, %v883
    %v1292 = vpack.c.b16 %v892, %v884
    %v1293 = vpack.c.b16 %v893, %v885
    %v1294 = vpack.c.b16 %v894, %v886
    %v1295 = vpack.c.b16 %v895, %v887
    %v1296 = vpack.c.b16 %v904, %v896
    %v1297 = vpack.c.b16 %v905, %v897
    %v1298 = vpack.c.b16 %v906, %v898
    %v1299 = vpack.c.b16 %v907, %v899
    %v1300 = vpack.c.b16 %v908, %v900
    %v1301 = vpack.c.b16 %v909, %v901
    %v1302 = vpack.c.b16 %v910, %v902
    %v1303 = vpack.c.b16 %v911, %v903
    %v1304 = vpack.c.b16 %v920, %v912
    %v1305 = vpack.c.b16 %v921, %v913
    %v1306 = vpack.c.b16 %v922, %v914
    %v1307 = vpack.c.b16 %v923, %v915
    %v1308 = vpack.c.b16 %v924, %v916
    %v1309 = vpack.c.b16 %v925, %v917
    %v1310 = vpack.c.b16 %v926, %v918
    %v1311 = vpack.c.b16 %v927, %v919
    %v1312 = vpack.c.b16 %v936, %v928
    %v1313 = vpack.c.b16 %v937, %v929
    %v1314 = vpack.c.b16 %v938, %v930
    %v1315 = vpack.c.b16 %v939, %v931
    %v1316 = vpack.c.b16 %v940, %v932
    %v1317 = vpack.c.b16 %v941, %v933
    %v1318 = vpack.c.b16 %v942, %v934
    %v1319 = vpack.c.b16 %v943, %v935
    %v1320 = vpack.c.b16 %v952, %v944
    %v1321 = vpack.c.b16 %v953, %v945
    %v1322 = vpack.c.b16 %v954, %v946
    %v1323 = vpack.c.b16 %v955, %v947
    %v1324 = vpack.c.b16 %v956, %v948
    %v1325 = vpack.c.b16 %v957, %v949
    %v1326 = vpack.c.b16 %v958, %v950
    %v1327 = vpack.c.b16 %v959, %v951
    %v1328 = vpack.c.b16 %v968, %v960
    %v1329 = vpack.c.b16 %v969, %v961
    %v1330 = vpack.c.b16 %v970, %v962
    %v1331 = vpack.c.b16 %v971, %v963
    %v1332 = vpack.c.b16 %v972, %v964
    %v1333 = vpack.c.b16 %v973, %v965
    %v1334 = vpack.c.b16 %v974, %v966
    %v1335 = vpack.c.b16 %v975, %v967
    %v1336 = vpack.c.b16 %v984, %v976
    %v1337 = vpack.c.b16 %v985, %v977
    %v1338 = vpack.c.b16 %v986, %v978
    %v1339 = vpack.c.b16 %v987, %v979
    %v1340 = vpack.c.b16 %v988, %v980
    %v1341 = vpack.c.b16 %v989, %v981
    %v1342 = vpack.c.b16 %v990, %v982
    %v1343 = vpack.c.b16 %v991, %v983
    %v1344 = vpack.c.b16 %v1000, %v992
    %v1345 = vpack.c.b16 %v1001, %v993
    %v1346 = vpack.c.b16 %v1002, %v994
    %v1347 = vpack.c.b16 %v1003, %v995
    %v1348 = vpack.c.b16 %v1004, %v996
    %v1349 = vpack.c.b16 %v1005, %v997
    %v1350 = vpack.c.b16 %v1006, %v998
    %v1351 = vpack.c.b16 %v1007, %v999
    %v1352 = vpack.c.b16 %v1016, %v1008
    %v1353 = vpack.c.b16 %v1017, %v1009
    %v1354 = vpack.c.b16 %v1018, %v1010
    %v1355 = vpack.c.b16 %v1019, %v1011
    %v1356 = vpack.c.b16 %v1020, %v1012
    %v1357 = vpack.c.b16 %v1021, %v1013
    %v1358 = vpack.c.b16 %v1022, %v1014
    %v1359 = vpack.c.b16 %v1023, %v1015
    %v1360 = vpack.c.b16 %v1032, %v1024
    %v1361 = vpack.c.b16 %v1033, %v1025
    %v1362 = vpack.c.b16 %v1034, %v1026
    %v1363 = vpack.c.b16 %v1035, %v1027
    %v1364 = vpack.c.b16 %v1036, %v1028
    %v1365 = vpack.c.b16 %v1037, %v1029
    %v1366 = vpack.c.b16 %v1038, %v1030
    %v1367 = vpack.c.b16 %v1039, %v1031
    %v1368 = vpack.c.b16 %v1048, %v1040
    %v1369 = vpack.c.b16 %v1049, %v1041
    %v1370 = vpack.c.b16 %v1050, %v1042
    %v1371 = vpack.c.b16 %v1051, %v1043
    %v1372 = vpack.c.b16 %v1052, %v1044
    %v1373 = vpack.c.b16 %v1053, %v1045
    %v1374 = vpack.c.b16 %v1054, %v1046
    %v1375 = vpack.c.b16 %v1055, %v1047
    %v1376 = vpack.c.b16 %v1064, %v1056
    %v1377 = vpack.c.b16 %v1065, %v1057
    %v1378 = vpack.c.b16 %v1066, %v1058
    %v1379 = vpack.c.b16 %v1067, %v1059
    %v1380 = vpack.c.b16 %v1068, %v1060
    %v1381 = vpack.c.b16 %v1069, %v1061
    %v1382 = vpack.c.b16 %v1070, %v1062
    %v1383 = vpack.c.b16 %v1071, %v1063
    %v1384 = vpack.c.b16 %v1080, %v1072
    %v1385 = vpack.c.b16 %v1081, %v1073
    %v1386 = vpack.c.b16 %v1082, %v1074
    %v1387 = vpack.c.b16 %v1083, %v1075
    %v1388 = vpack.c.b16 %v1084, %v1076
    %v1389 = vpack.c.b16 %v1085, %v1077
    %v1390 = vpack.c.b16 %v1086, %v1078
    %v1391 = vpack.c.b16 %v1087, %v1079
    %v1392 = vpack.c.b16 %v1096, %v1088
    %v1393 = vpack.c.b16 %v1097, %v1089
    %v1394 = vpack.c.b16 %v1098, %v1090
    %v1395 = vpack.c.b16 %v1099, %v1091
    %v1396 = vpack.c.b16 %v1100, %v1092
    %v1397 = vpack.c.b16 %v1101, %v1093
    %v1398 = vpack.c.b16 %v1102, %v1094
    %v1399 = vpack.c.b16 %v1103, %v1095
    %v1400 = vpack.c.b16 %v1112, %v1104
    %v1401 = vpack.c.b16 %v1113, %v1105
    %v1402 = vpack.c.b16 %v1114, %v1106
    %v1403 = vpack.c.b16 %v1115, %v1107
    %v1404 = vpack.c.b16 %v1116, %v1108
    %v1405 = vpack.c.b16 %v1117, %v1109
    %v1406 = vpack.c.b16 %v1118, %v1110
    %v1407 = vpack.c.b16 %v1119, %v1111
    %v1408 = vpack.c.b16 %v1128, %v1120
    %v1409 = vpack.c.b16 %v1129, %v1121
    %v1410 = vpack.c.b16 %v1130, %v1122
    %v1411 = vpack.c.b16 %v1131, %v1123
    %v1412 = vpack.c.b16 %v1132, %v1124
    %v1413 = vpack.c.b16 %v1133, %v1125
    %v1414 = vpack.c.b16 %v1134, %v1126
    %v1415 = vpack.c.b16 %v1135, %v1127
    %v1416 = vpack.c.b16 %v1144, %v1136
    %v1417 = vpack.c.b16 %v1145, %v1137
    %v1418 = vpack.c.b16 %v1146, %v1138
    %v1419 = vpack.c.b16 %v1147, %v1139
    %v1420 = vpack.c.b16 %v1148, %v1140
    %v1421 = vpack.c.b16 %v1149, %v1141
    %v1422 = vpack.c.b16 %v1150, %v1142
    %v1423 = vpack.c.b16 %v1151, %v1143
    %v1424 = vpack.c.b16 %v1160, %v1152
    %v1425 = vpack.c.b16 %v1161, %v1153
    %v1426 = vpack.c.b16 %v1162, %v1154
    %v1427 = vpack.c.b16 %v1163, %v1155
    %v1428 = vpack.c.b16 %v1164, %v1156
    %v1429 = vpack.c.b16 %v1165, %v1157
    %v1430 = vpack.c.b16 %v1166, %v1158
    %v1431 = vpack.c.b16 %v1167, %v1159
    %v1432 = vpack.c.b16 %v1176, %v1168
    %v1433 = vpack.c.b16 %v1177, %v1169
    %v1434 = vpack.c.b16 %v1178, %v1170
    %v1435 = vpack.c.b16 %v1179, %v1171
    %v1436 = vpack.c.b16 %v1180, %v1172
    %v1437 = vpack.c.b16 %v1181, %v1173
    %v1438 = vpack.c.b16 %v1182, %v1174
    %v1439 = vpack.c.b16 %v1183, %v1175
    %1696 = vmatprep.subr.bf16.mxu0 %v1185
    %1697 = vmatpush1.bf16.msra.mxu0 %v1184
    %1698 = vmatprep.subr.bf16.mxu0 %v1193
    %1699 = vmatpush1.bf16.msra.mxu0 %v1192
    %1700 = vmatprep.subr.bf16.mxu0 %v1201
    %1701 = vmatpush1.bf16.msra.mxu0 %v1200
    %1702 = vmatprep.subr.bf16.mxu0 %v1209
    %1703 = vmatpush1.bf16.msra.mxu0 %v1208
    %1704 = vmatprep.subr.bf16.mxu0 %v1217
    %1705 = vmatpush1.bf16.msra.mxu0 %v1216
    %1706 = vmatprep.subr.bf16.mxu0 %v1225
    %1707 = vmatpush1.bf16.msra.mxu0 %v1224
    %1708 = vmatprep.subr.bf16.mxu0 %v1233
    %1709 = vmatpush1.bf16.msra.mxu0 %v1232
    %1710 = vmatprep.subr.bf16.mxu0 %v1241
    %1711 = vmatpush1.bf16.msra.mxu0 %v1240
    %1712 = vmatprep.subr.bf16.mxu0 %v1249
    %1713 = vmatpush1.bf16.msra.mxu0 %v1248
    %1714 = vmatprep.subr.bf16.mxu0 %v1257
    %1715 = vmatpush1.bf16.msra.mxu0 %v1256
    %1716 = vmatprep.subr.bf16.mxu0 %v1265
    %1717 = vmatpush1.bf16.msra.mxu0 %v1264
    %1718 = vmatprep.subr.bf16.mxu0 %v1273
    %1719 = vmatpush1.bf16.msra.mxu0 %v1272
    %1720 = vmatprep.subr.bf16.mxu0 %v1281
    %1721 = vmatpush1.bf16.msra.mxu0 %v1280
    %1722 = vmatprep.subr.bf16.mxu0 %v1289
    %1723 = vmatpush1.bf16.msra.mxu0 %v1288
    %1724 = vmatprep.subr.bf16.mxu0 %v1297
    %1725 = vmatpush1.bf16.msra.mxu0 %v1296
    %1726 = vmatprep.subr.bf16.mxu0 %v1305
    %1727 = vmatpush1.bf16.msra.mxu0 %v1304
    %1728 = vmatprep.mubr.bf16.mxu0 %v409
    %1729 = vmatmul.mubr.bf16.gmra.mrb[0].mxu0 %v408
    %v1730 = vpop.f32.mrb[0].mxu0
    %v1731 = vadd.f32 %v359, %v1730
    %v1732 = vpop.f32.mrb[0].mxu0
    %v1733 = vadd.f32 %v363, %v1732
    %v1734 = vpop.f32.mrb[0].mxu0
    %v1735 = vadd.f32 %v359, %v1734
    %v1736 = vpop.f32.mrb[0].mxu0
    %v1737 = vadd.f32 %v363, %v1736
    %1738 = vdwg.mxu0
    %1739 = vmatprep.subr.bf16.mxu0 %v1313
    %1740 = vmatpush1.bf16.msra.mxu0 %v1312
    %1741 = vmatprep.subr.bf16.mxu0 %v1321
    %1742 = vmatpush1.bf16.msra.mxu0 %v1320
    %1743 = vmatprep.subr.bf16.mxu0 %v1329
    %1744 = vmatpush1.bf16.msra.mxu0 %v1328
    %1745 = vmatprep.subr.bf16.mxu0 %v1337
    %1746 = vmatpush1.bf16.msra.mxu0 %v1336
    %1747 = vmatprep.subr.bf16.mxu0 %v1345
    %1748 = vmatpush1.bf16.msra.mxu0 %v1344
    %1749 = vmatprep.subr.bf16.mxu0 %v1353
    %1750 = vmatpush1.bf16.msra.mxu0 %v1352
    %1751 = vmatprep.subr.bf16.mxu0 %v1361
    %1752 = vmatpush1.bf16.msra.mxu0 %v1360
    %1753 = vmatprep.subr.bf16.mxu0 %v1369
    %1754 = vmatpush1.bf16.msra.mxu0 %v1368
    %1755 = vmatprep.subr.bf16.mxu0 %v1377
    %1756 = vmatpush1.bf16.msra.mxu0 %v1376
    %1757 = vmatprep.subr.bf16.mxu0 %v1385
    %1758 = vmatpush1.bf16.msra.mxu0 %v1384
    %1759 = vmatprep.subr.bf16.mxu0 %v1393
    %1760 = vmatpush1.bf16.msra.mxu0 %v1392
    %1761 = vmatprep.subr.bf16.mxu0 %v1401
    %1762 = vmatpush1.bf16.msra.mxu0 %v1400
    %1763 = vmatprep.subr.bf16.mxu0 %v1409
    %1764 = vmatpush1.bf16.msra.mxu0 %v1408
    %1765 = vmatprep.subr.bf16.mxu0 %v1417
    %1766 = vmatpush1.bf16.msra.mxu0 %v1416
    %1767 = vmatprep.subr.bf16.mxu0 %v1425
    %1768 = vmatpush1.bf16.msra.mxu0 %v1424
    %1769 = vmatprep.subr.bf16.mxu0 %v1433
    %1770 = vmatpush1.bf16.msra.mxu0 %v1432
    %1771 = vmatprep.mubr.bf16.mxu0 %v411
    %1772 = vmatmul.mubr.bf16.gmra.mrb[0].mxu0 %v410
    %v1773 = vpop.f32.mrb[0].mxu0
    %v1774 = vadd.f32 %v1731, %v1773
    %v1775 = vpop.f32.mrb[0].mxu0
    %v1776 = vadd.f32 %v1733, %v1775
    %v1777 = vpop.f32.mrb[0].mxu0
    %v1778 = vadd.f32 %v1735, %v1777
    %v1779 = vpop.f32.mrb[0].mxu0
    %v1780 = vadd.f32 %v1737, %v1779
    %1781 = vdwg.mxu0
    %1782 = vmatprep.subr.bf16.mxu0 %v1187
    %1783 = vmatpush1.bf16.msra.mxu0 %v1186
    %1784 = vmatprep.subr.bf16.mxu0 %v1195
    %1785 = vmatpush1.bf16.msra.mxu0 %v1194
    %1786 = vmatprep.subr.bf16.mxu0 %v1203
    %1787 = vmatpush1.bf16.msra.mxu0 %v1202
    %1788 = vmatprep.subr.bf16.mxu0 %v1211
    %1789 = vmatpush1.bf16.msra.mxu0 %v1210
    %1790 = vmatprep.subr.bf16.mxu0 %v1219
    %1791 = vmatpush1.bf16.msra.mxu0 %v1218
    %1792 = vmatprep.subr.bf16.mxu0 %v1227
    %1793 = vmatpush1.bf16.msra.mxu0 %v1226
    %1794 = vmatprep.subr.bf16.mxu0 %v1235
    %1795 = vmatpush1.bf16.msra.mxu0 %v1234
    %1796 = vmatprep.subr.bf16.mxu0 %v1243
    %1797 = vmatpush1.bf16.msra.mxu0 %v1242
    %1798 = vmatprep.subr.bf16.mxu0 %v1251
    %1799 = vmatpush1.bf16.msra.mxu0 %v1250
    %1800 = vmatprep.subr.bf16.mxu0 %v1259
    %1801 = vmatpush1.bf16.msra.mxu0 %v1258
    %1802 = vmatprep.subr.bf16.mxu0 %v1267
    %1803 = vmatpush1.bf16.msra.mxu0 %v1266
    %1804 = vmatprep.subr.bf16.mxu0 %v1275
    %1805 = vmatpush1.bf16.msra.mxu0 %v1274
    %1806 = vmatprep.subr.bf16.mxu0 %v1283
    %1807 = vmatpush1.bf16.msra.mxu0 %v1282
    %1808 = vmatprep.subr.bf16.mxu0 %v1291
    %1809 = vmatpush1.bf16.msra.mxu0 %v1290
    %1810 = vmatprep.subr.bf16.mxu0 %v1299
    %1811 = vmatpush1.bf16.msra.mxu0 %v1298
    %1812 = vmatprep.subr.bf16.mxu0 %v1307
    %1813 = vmatpush1.bf16.msra.mxu0 %v1306
    %1814 = vmatprep.mubr.bf16.mxu0 %v409
    %1815 = vmatmul.mubr.bf16.gmra.mrb[0].mxu0 %v408
    %v1816 = vpop.f32.mrb[0].mxu0
    %v1817 = vadd.f32 %v367, %v1816
    %v1818 = vpop.f32.mrb[0].mxu0
    %v1819 = vadd.f32 %v371, %v1818
    %v1820 = vpop.f32.mrb[0].mxu0
    %v1821 = vadd.f32 %v367, %v1820
    %v1822 = vpop.f32.mrb[0].mxu0
    %v1823 = vadd.f32 %v371, %v1822
    %1824 = vdwg.mxu0
    %1825 = vmatprep.subr.bf16.mxu0 %v1315
    %1826 = vmatpush1.bf16.msra.mxu0 %v1314
    %1827 = vmatprep.subr.bf16.mxu0 %v1323
    %1828 = vmatpush1.bf16.msra.mxu0 %v1322
    %1829 = vmatprep.subr.bf16.mxu0 %v1331
    %1830 = vmatpush1.bf16.msra.mxu0 %v1330
    %1831 = vmatprep.subr.bf16.mxu0 %v1339
    %1832 = vmatpush1.bf16.msra.mxu0 %v1338
    %1833 = vmatprep.subr.bf16.mxu0 %v1347
    %1834 = vmatpush1.bf16.msra.mxu0 %v1346
    %1835 = vmatprep.subr.bf16.mxu0 %v1355
    %1836 = vmatpush1.bf16.msra.mxu0 %v1354
    %1837 = vmatprep.subr.bf16.mxu0 %v1363
    %1838 = vmatpush1.bf16.msra.mxu0 %v1362
    %1839 = vmatprep.subr.bf16.mxu0 %v1371
    %1840 = vmatpush1.bf16.msra.mxu0 %v1370
    %1841 = vmatprep.subr.bf16.mxu0 %v1379
    %1842 = vmatpush1.bf16.msra.mxu0 %v1378
    %1843 = vmatprep.subr.bf16.mxu0 %v1387
    %1844 = vmatpush1.bf16.msra.mxu0 %v1386
    %1845 = vmatprep.subr.bf16.mxu0 %v1395
    %1846 = vmatpush1.bf16.msra.mxu0 %v1394
    %1847 = vmatprep.subr.bf16.mxu0 %v1403
    %1848 = vmatpush1.bf16.msra.mxu0 %v1402
    %1849 = vmatprep.subr.bf16.mxu0 %v1411
    %1850 = vmatpush1.bf16.msra.mxu0 %v1410
    %1851 = vmatprep.subr.bf16.mxu0 %v1419
    %1852 = vmatpush1.bf16.msra.mxu0 %v1418
    %1853 = vmatprep.subr.bf16.mxu0 %v1427
    %1854 = vmatpush1.bf16.msra.mxu0 %v1426
    %1855 = vmatprep.subr.bf16.mxu0 %v1435
    %1856 = vmatpush1.bf16.msra.mxu0 %v1434
    %1857 = vmatprep.mubr.bf16.mxu0 %v411
    %1858 = vmatmul.mubr.bf16.gmra.mrb[0].mxu0 %v410
    %v1859 = vpop.f32.mrb[0].mxu0
    %v1860 = vadd.f32 %v1817, %v1859
    %v1861 = vpop.f32.mrb[0].mxu0
    %v1862 = vadd.f32 %v1819, %v1861
    %v1863 = vpop.f32.mrb[0].mxu0
    %v1864 = vadd.f32 %v1821, %v1863
    %v1865 = vpop.f32.mrb[0].mxu0
    %v1866 = vadd.f32 %v1823, %v1865
    %1867 = vdwg.mxu0
    %1868 = vmatprep.subr.bf16.mxu0 %v1189
    %1869 = vmatpush1.bf16.msra.mxu0 %v1188
    %1870 = vmatprep.subr.bf16.mxu0 %v1197
    %1871 = vmatpush1.bf16.msra.mxu0 %v1196
    %1872 = vmatprep.subr.bf16.mxu0 %v1205
    %1873 = vmatpush1.bf16.msra.mxu0 %v1204
    %1874 = vmatprep.subr.bf16.mxu0 %v1213
    %1875 = vmatpush1.bf16.msra.mxu0 %v1212
    %1876 = vmatprep.subr.bf16.mxu0 %v1221
    %1877 = vmatpush1.bf16.msra.mxu0 %v1220
    %1878 = vmatprep.subr.bf16.mxu0 %v1229
    %1879 = vmatpush1.bf16.msra.mxu0 %v1228
    %1880 = vmatprep.subr.bf16.mxu0 %v1237
    %1881 = vmatpush1.bf16.msra.mxu0 %v1236
    %1882 = vmatprep.subr.bf16.mxu0 %v1245
    %1883 = vmatpush1.bf16.msra.mxu0 %v1244
    %1884 = vmatprep.subr.bf16.mxu0 %v1253
    %1885 = vmatpush1.bf16.msra.mxu0 %v1252
    %1886 = vmatprep.subr.bf16.mxu0 %v1261
    %1887 = vmatpush1.bf16.msra.mxu0 %v1260
    %1888 = vmatprep.subr.bf16.mxu0 %v1269
    %1889 = vmatpush1.bf16.msra.mxu0 %v1268
    %1890 = vmatprep.subr.bf16.mxu0 %v1277
    %1891 = vmatpush1.bf16.msra.mxu0 %v1276
    %1892 = vmatprep.subr.bf16.mxu0 %v1285
    %1893 = vmatpush1.bf16.msra.mxu0 %v1284
    %1894 = vmatprep.subr.bf16.mxu0 %v1293
    %1895 = vmatpush1.bf16.msra.mxu0 %v1292
    %1896 = vmatprep.subr.bf16.mxu0 %v1301
    %1897 = vmatpush1.bf16.msra.mxu0 %v1300
    %1898 = vmatprep.subr.bf16.mxu0 %v1309
    %1899 = vmatpush1.bf16.msra.mxu0 %v1308
    %1900 = vmatprep.mubr.bf16.mxu0 %v409
    %1901 = vmatmul.mubr.bf16.gmra.mrb[0].mxu0 %v408
    %v1902 = vpop.f32.mrb[0].mxu0
    %v1903 = vadd.f32 %v375, %v1902
    %v1904 = vpop.f32.mrb[0].mxu0
    %v1905 = vadd.f32 %v379, %v1904
    %v1906 = vpop.f32.mrb[0].mxu0
    %v1907 = vadd.f32 %v375, %v1906
    %v1908 = vpop.f32.mrb[0].mxu0
    %v1909 = vadd.f32 %v379, %v1908
    %1910 = vdwg.mxu0
    %1911 = vmatprep.subr.bf16.mxu0 %v1317
    %1912 = vmatpush1.bf16.msra.mxu0 %v1316
    %1913 = vmatprep.subr.bf16.mxu0 %v1325
    %1914 = vmatpush1.bf16.msra.mxu0 %v1324
    %1915 = vmatprep.subr.bf16.mxu0 %v1333
    %1916 = vmatpush1.bf16.msra.mxu0 %v1332
    %1917 = vmatprep.subr.bf16.mxu0 %v1341
    %1918 = vmatpush1.bf16.msra.mxu0 %v1340
    %1919 = vmatprep.subr.bf16.mxu0 %v1349
    %1920 = vmatpush1.bf16.msra.mxu0 %v1348
    %1921 = vmatprep.subr.bf16.mxu0 %v1357
    %1922 = vmatpush1.bf16.msra.mxu0 %v1356
    %1923 = vmatprep.subr.bf16.mxu0 %v1365
    %1924 = vmatpush1.bf16.msra.mxu0 %v1364
    %1925 = vmatprep.subr.bf16.mxu0 %v1373
    %1926 = vmatpush1.bf16.msra.mxu0 %v1372
    %1927 = vmatprep.subr.bf16.mxu0 %v1381
    %1928 = vmatpush1.bf16.msra.mxu0 %v1380
    %1929 = vmatprep.subr.bf16.mxu0 %v1389
    %1930 = vmatpush1.bf16.msra.mxu0 %v1388
    %1931 = vmatprep.subr.bf16.mxu0 %v1397
    %1932 = vmatpush1.bf16.msra.mxu0 %v1396
    %1933 = vmatprep.subr.bf16.mxu0 %v1405
    %1934 = vmatpush1.bf16.msra.mxu0 %v1404
    %1935 = vmatprep.subr.bf16.mxu0 %v1413
    %1936 = vmatpush1.bf16.msra.mxu0 %v1412
    %1937 = vmatprep.subr.bf16.mxu0 %v1421
    %1938 = vmatpush1.bf16.msra.mxu0 %v1420
    %1939 = vmatprep.subr.bf16.mxu0 %v1429
    %1940 = vmatpush1.bf16.msra.mxu0 %v1428
    %1941 = vmatprep.subr.bf16.mxu0 %v1437
    %1942 = vmatpush1.bf16.msra.mxu0 %v1436
    %1943 = vmatprep.mubr.bf16.mxu0 %v411
    %1944 = vmatmul.mubr.bf16.gmra.mrb[0].mxu0 %v410
    %v1945 = vpop.f32.mrb[0].mxu0
    %v1946 = vadd.f32 %v1903, %v1945
    %v1947 = vpop.f32.mrb[0].mxu0
    %v1948 = vadd.f32 %v1905, %v1947
    %v1949 = vpop.f32.mrb[0].mxu0
    %v1950 = vadd.f32 %v1907, %v1949
    %v1951 = vpop.f32.mrb[0].mxu0
    %v1952 = vadd.f32 %v1909, %v1951
    %1953 = vdwg.mxu0
    %1954 = vmatprep.subr.bf16.mxu0 %v1191
    %1955 = vmatpush1.bf16.msra.mxu0 %v1190
    %1956 = vmatprep.subr.bf16.mxu0 %v1199
    %1957 = vmatpush1.bf16.msra.mxu0 %v1198
    %1958 = vmatprep.subr.bf16.mxu0 %v1207
    %1959 = vmatpush1.bf16.msra.mxu0 %v1206
    %1960 = vmatprep.subr.bf16.mxu0 %v1215
    %1961 = vmatpush1.bf16.msra.mxu0 %v1214
    %1962 = vmatprep.subr.bf16.mxu0 %v1223
    %1963 = vmatpush1.bf16.msra.mxu0 %v1222
    %1964 = vmatprep.subr.bf16.mxu0 %v1231
    %1965 = vmatpush1.bf16.msra.mxu0 %v1230
    %1966 = vmatprep.subr.bf16.mxu0 %v1239
    %1967 = vmatpush1.bf16.msra.mxu0 %v1238
    %1968 = vmatprep.subr.bf16.mxu0 %v1247
    %1969 = vmatpush1.bf16.msra.mxu0 %v1246
    %1970 = vmatprep.subr.bf16.mxu0 %v1255
    %1971 = vmatpush1.bf16.msra.mxu0 %v1254
    %1972 = vmatprep.subr.bf16.mxu0 %v1263
    %1973 = vmatpush1.bf16.msra.mxu0 %v1262
    %1974 = vmatprep.subr.bf16.mxu0 %v1271
    %1975 = vmatpush1.bf16.msra.mxu0 %v1270
    %1976 = vmatprep.subr.bf16.mxu0 %v1279
    %1977 = vmatpush1.bf16.msra.mxu0 %v1278
    %1978 = vmatprep.subr.bf16.mxu0 %v1287
    %1979 = vmatpush1.bf16.msra.mxu0 %v1286
    %1980 = vmatprep.subr.bf16.mxu0 %v1295
    %1981 = vmatpush1.bf16.msra.mxu0 %v1294
    %1982 = vmatprep.subr.bf16.mxu0 %v1303
    %1983 = vmatpush1.bf16.msra.mxu0 %v1302
    %1984 = vmatprep.subr.bf16.mxu0 %v1311
    %1985 = vmatpush1.bf16.msra.mxu0 %v1310
    %1986 = vmatprep.mubr.bf16.mxu0 %v409
    %1987 = vmatmul.mubr.bf16.gmra.mrb[0].mxu0 %v408
    %v1988 = vpop.f32.mrb[0].mxu0
    %v1989 = vadd.f32 %v383, %v1988
    %v1990 = vpop.f32.mrb[0].mxu0
    %v1991 = vadd.f32 %v387, %v1990
    %v1992 = vpop.f32.mrb[0].mxu0
    %v1993 = vadd.f32 %v383, %v1992
    %v1994 = vpop.f32.mrb[0].mxu0
    %v1995 = vadd.f32 %v387, %v1994
    %1996 = vdwg.mxu0
    %1997 = vmatprep.subr.bf16.mxu0 %v1319
    %1998 = vmatpush1.bf16.msra.mxu0 %v1318
    %1999 = vmatprep.subr.bf16.mxu0 %v1327
    %2000 = vmatpush1.bf16.msra.mxu0 %v1326
    %2001 = vmatprep.subr.bf16.mxu0 %v1335
    %2002 = vmatpush1.bf16.msra.mxu0 %v1334
    %2003 = vmatprep.subr.bf16.mxu0 %v1343
    %2004 = vmatpush1.bf16.msra.mxu0 %v1342
    %2005 = vmatprep.subr.bf16.mxu0 %v1351
    %2006 = vmatpush1.bf16.msra.mxu0 %v1350
    %2007 = vmatprep.subr.bf16.mxu0 %v1359
    %2008 = vmatpush1.bf16.msra.mxu0 %v1358
    %2009 = vmatprep.subr.bf16.mxu0 %v1367
    %2010 = vmatpush1.bf16.msra.mxu0 %v1366
    %2011 = vmatprep.subr.bf16.mxu0 %v1375
    %2012 = vmatpush1.bf16.msra.mxu0 %v1374
    %2013 = vmatprep.subr.bf16.mxu0 %v1383
    %2014 = vmatpush1.bf16.msra.mxu0 %v1382
    %2015 = vmatprep.subr.bf16.mxu0 %v1391
    %2016 = vmatpush1.bf16.msra.mxu0 %v1390
    %2017 = vmatprep.subr.bf16.mxu0 %v1399
    %2018 = vmatpush1.bf16.msra.mxu0 %v1398
    %2019 = vmatprep.subr.bf16.mxu0 %v1407
    %2020 = vmatpush1.bf16.msra.mxu0 %v1406
    %2021 = vmatprep.subr.bf16.mxu0 %v1415
    %2022 = vmatpush1.bf16.msra.mxu0 %v1414
    %2023 = vmatprep.subr.bf16.mxu0 %v1423
    %2024 = vmatpush1.bf16.msra.mxu0 %v1422
    %2025 = vmatprep.subr.bf16.mxu0 %v1431
    %2026 = vmatpush1.bf16.msra.mxu0 %v1430
    %2027 = vmatprep.subr.bf16.mxu0 %v1439
    %2028 = vmatpush1.bf16.msra.mxu0 %v1438
    %2029 = vmatprep.mubr.bf16.mxu0 %v411
    %2030 = vmatmul.mubr.bf16.gmra.mrb[0].mxu0 %v410
    %v2031 = vpop.f32.mrb[0].mxu0
    %v2032 = vadd.f32 %v1989, %v2031
    %v2033 = vpop.f32.mrb[0].mxu0
    %v2034 = vadd.f32 %v1991, %v2033
    %v2035 = vpop.f32.mrb[0].mxu0
    %v2036 = vadd.f32 %v1993, %v2035
    %v2037 = vpop.f32.mrb[0].mxu0
    %v2038 = vadd.f32 %v1995, %v2037
    %2039 = vdwg.mxu0
    %v2040 = vmax.f32 %v1774, 0.0
    %v2041 = vmax.f32 %v1776, 0.0
    %v2042 = vmax.f32 %v1860, 0.0
    %v2043 = vmax.f32 %v1862, 0.0
    %v2044 = vmax.f32 %v1946, 0.0
    %v2045 = vmax.f32 %v1948, 0.0
    %v2046 = vmax.f32 %v2032, 0.0
    %v2047 = vmax.f32 %v2034, 0.0
    %v2048 = vmax.f32 %v1778, 0.0
    %v2049 = vmax.f32 %v1780, 0.0
    %v2050 = vmax.f32 %v1864, 0.0
    %v2051 = vmax.f32 %v1866, 0.0
    %v2052 = vmax.f32 %v1950, 0.0
    %v2053 = vmax.f32 %v1952, 0.0
    %v2054 = vmax.f32 %v2036, 0.0
    %v2055 = vmax.f32 %v2038, 0.0
    %v2056 = vpack.c.bf16 %v2048, %v2040
    %v2057 = vpack.c.bf16 %v2049, %v2041
    %v2058 = vpack.c.bf16 %v2050, %v2042
    %v2059 = vpack.c.bf16 %v2051, %v2043
    %v2060 = vpack.c.bf16 %v2052, %v2044
    %v2061 = vpack.c.bf16 %v2053, %v2045
    %v2062 = vpack.c.bf16 %v2054, %v2046
    %v2063 = vpack.c.bf16 %v2055, %v2047
    %v2064 = vld [vmem:[#allocation8] sm:$0xf]
    %v2065 = vld [vmem:[#allocation8 + $0x4] sm:$0xf]
    %v2066 = vld [vmem:[#allocation8 + $0x8] sm:$0xf]
    %v2067 = vld [vmem:[#allocation8 + $0xc] sm:$0xf]
    %v2068 = vld [vmem:[#allocation8 + $0x10] sm:$0xf]
    %v2069 = vld [vmem:[#allocation8 + $0x14] sm:$0xf]
    %v2070 = vld [vmem:[#allocation8 + $0x18] sm:$0xf]
    %v2071 = vld [vmem:[#allocation8 + $0x1c] sm:$0xf]
    %v2072 = vld [vmem:[#allocation8 + $0x20] sm:$0xf]
    %v2073 = vld [vmem:[#allocation8 + $0x24] sm:$0xf]
    %v2074 = vld [vmem:[#allocation8 + $0x28] sm:$0xf]
    %v2075 = vld [vmem:[#allocation8 + $0x2c] sm:$0xf]
    %v2076 = vld [vmem:[#allocation8 + $0x30] sm:$0xf]
    %v2077 = vld [vmem:[#allocation8 + $0x34] sm:$0xf]
    %v2078 = vld [vmem:[#allocation8 + $0x38] sm:$0xf]
    %v2079 = vld [vmem:[#allocation8 + $0x3c] sm:$0xf]
    %v2080 = vld [vmem:[#allocation8 + $0x40] sm:$0xf]
    %v2081 = vld [vmem:[#allocation8 + $0x44] sm:$0xf]
    %v2082 = vld [vmem:[#allocation8 + $0x48] sm:$0xf]
    %v2083 = vld [vmem:[#allocation8 + $0x4c] sm:$0xf]
    %v2084 = vld [vmem:[#allocation8 + $0x50] sm:$0xf]
    %v2085 = vld [vmem:[#allocation8 + $0x54] sm:$0xf]
    %v2086 = vld [vmem:[#allocation8 + $0x58] sm:$0xf]
    %v2087 = vld [vmem:[#allocation8 + $0x5c] sm:$0xf]
    %v2088 = vld [vmem:[#allocation8 + $0x60] sm:$0xf]
    %v2089 = vld [vmem:[#allocation8 + $0x64] sm:$0xf]
    %v2090 = vld [vmem:[#allocation8 + $0x68] sm:$0xf]
    %v2091 = vld [vmem:[#allocation8 + $0x6c] sm:$0xf]
    %v2092 = vld [vmem:[#allocation8 + $0x70] sm:$0xf]
    %v2093 = vld [vmem:[#allocation8 + $0x74] sm:$0xf]
    %v2094 = vld [vmem:[#allocation8 + $0x78] sm:$0xf]
    %v2095 = vld [vmem:[#allocation8 + $0x7c] sm:$0xf]
    %v2096 = vld [vmem:[#allocation8 + $0x80] sm:$0xf]
    %v2097 = vld [vmem:[#allocation8 + $0x84] sm:$0xf]
    %v2098 = vld [vmem:[#allocation8 + $0x88] sm:$0xf]
    %v2099 = vld [vmem:[#allocation8 + $0x8c] sm:$0xf]
    %v2100 = vld [vmem:[#allocation8 + $0x90] sm:$0xf]
    %v2101 = vld [vmem:[#allocation8 + $0x94] sm:$0xf]
    %v2102 = vld [vmem:[#allocation8 + $0x98] sm:$0xf]
    %v2103 = vld [vmem:[#allocation8 + $0x9c] sm:$0xf]
    %v2104 = vld [vmem:[#allocation8 + $0xa0] sm:$0xf]
    %v2105 = vld [vmem:[#allocation8 + $0xa4] sm:$0xf]
    %v2106 = vld [vmem:[#allocation8 + $0xa8] sm:$0xf]
    %v2107 = vld [vmem:[#allocation8 + $0xac] sm:$0xf]
    %v2108 = vld [vmem:[#allocation8 + $0xb0] sm:$0xf]
    %v2109 = vld [vmem:[#allocation8 + $0xb4] sm:$0xf]
    %v2110 = vld [vmem:[#allocation8 + $0xb8] sm:$0xf]
    %v2111 = vld [vmem:[#allocation8 + $0xbc] sm:$0xf]
    %v2112 = vld [vmem:[#allocation8 + $0xc0] sm:$0xf]
    %v2113 = vld [vmem:[#allocation8 + $0xc4] sm:$0xf]
    %v2114 = vld [vmem:[#allocation8 + $0xc8] sm:$0xf]
    %v2115 = vld [vmem:[#allocation8 + $0xcc] sm:$0xf]
    %v2116 = vld [vmem:[#allocation8 + $0xd0] sm:$0xf]
    %v2117 = vld [vmem:[#allocation8 + $0xd4] sm:$0xf]
    %v2118 = vld [vmem:[#allocation8 + $0xd8] sm:$0xf]
    %v2119 = vld [vmem:[#allocation8 + $0xdc] sm:$0xf]
    %v2120 = vld [vmem:[#allocation8 + $0xe0] sm:$0xf]
    %v2121 = vld [vmem:[#allocation8 + $0xe4] sm:$0xf]
    %v2122 = vld [vmem:[#allocation8 + $0xe8] sm:$0xf]
    %v2123 = vld [vmem:[#allocation8 + $0xec] sm:$0xf]
    %v2124 = vld [vmem:[#allocation8 + $0xf0] sm:$0xf]
    %v2125 = vld [vmem:[#allocation8 + $0xf4] sm:$0xf]
    %v2126 = vld [vmem:[#allocation8 + $0xf8] sm:$0xf]
    %v2127 = vld [vmem:[#allocation8 + $0xfc] sm:$0xf]
    %v2128 = vld [vmem:[#allocation8 + $0x100] sm:$0xf]
    %v2129 = vld [vmem:[#allocation8 + $0x104] sm:$0xf]
    %v2130 = vld [vmem:[#allocation8 + $0x108] sm:$0xf]
    %v2131 = vld [vmem:[#allocation8 + $0x10c] sm:$0xf]
    %v2132 = vld [vmem:[#allocation8 + $0x110] sm:$0xf]
    %v2133 = vld [vmem:[#allocation8 + $0x114] sm:$0xf]
    %v2134 = vld [vmem:[#allocation8 + $0x118] sm:$0xf]
    %v2135 = vld [vmem:[#allocation8 + $0x11c] sm:$0xf]
    %v2136 = vld [vmem:[#allocation8 + $0x120] sm:$0xf]
    %v2137 = vld [vmem:[#allocation8 + $0x124] sm:$0xf]
    %v2138 = vld [vmem:[#allocation8 + $0x128] sm:$0xf]
    %v2139 = vld [vmem:[#allocation8 + $0x12c] sm:$0xf]
    %v2140 = vld [vmem:[#allocation8 + $0x130] sm:$0xf]
    %v2141 = vld [vmem:[#allocation8 + $0x134] sm:$0xf]
    %v2142 = vld [vmem:[#allocation8 + $0x138] sm:$0xf]
    %v2143 = vld [vmem:[#allocation8 + $0x13c] sm:$0xf]
    %v2144 = vld [vmem:[#allocation8 + $0x140] sm:$0xf]
    %v2145 = vld [vmem:[#allocation8 + $0x144] sm:$0xf]
    %v2146 = vld [vmem:[#allocation8 + $0x148] sm:$0xf]
    %v2147 = vld [vmem:[#allocation8 + $0x14c] sm:$0xf]
    %v2148 = vld [vmem:[#allocation8 + $0x150] sm:$0xf]
    %v2149 = vld [vmem:[#allocation8 + $0x154] sm:$0xf]
    %v2150 = vld [vmem:[#allocation8 + $0x158] sm:$0xf]
    %v2151 = vld [vmem:[#allocation8 + $0x15c] sm:$0xf]
    %v2152 = vld [vmem:[#allocation8 + $0x160] sm:$0xf]
    %v2153 = vld [vmem:[#allocation8 + $0x164] sm:$0xf]
    %v2154 = vld [vmem:[#allocation8 + $0x168] sm:$0xf]
    %v2155 = vld [vmem:[#allocation8 + $0x16c] sm:$0xf]
    %v2156 = vld [vmem:[#allocation8 + $0x170] sm:$0xf]
    %v2157 = vld [vmem:[#allocation8 + $0x174] sm:$0xf]
    %v2158 = vld [vmem:[#allocation8 + $0x178] sm:$0xf]
    %v2159 = vld [vmem:[#allocation8 + $0x17c] sm:$0xf]
    %v2160 = vld [vmem:[#allocation8 + $0x180] sm:$0xf]
    %v2161 = vld [vmem:[#allocation8 + $0x184] sm:$0xf]
    %v2162 = vld [vmem:[#allocation8 + $0x188] sm:$0xf]
    %v2163 = vld [vmem:[#allocation8 + $0x18c] sm:$0xf]
    %v2164 = vld [vmem:[#allocation8 + $0x190] sm:$0xf]
    %v2165 = vld [vmem:[#allocation8 + $0x194] sm:$0xf]
    %v2166 = vld [vmem:[#allocation8 + $0x198] sm:$0xf]
    %v2167 = vld [vmem:[#allocation8 + $0x19c] sm:$0xf]
    %v2168 = vld [vmem:[#allocation8 + $0x1a0] sm:$0xf]
    %v2169 = vld [vmem:[#allocation8 + $0x1a4] sm:$0xf]
    %v2170 = vld [vmem:[#allocation8 + $0x1a8] sm:$0xf]
    %v2171 = vld [vmem:[#allocation8 + $0x1ac] sm:$0xf]
    %v2172 = vld [vmem:[#allocation8 + $0x1b0] sm:$0xf]
    %v2173 = vld [vmem:[#allocation8 + $0x1b4] sm:$0xf]
    %v2174 = vld [vmem:[#allocation8 + $0x1b8] sm:$0xf]
    %v2175 = vld [vmem:[#allocation8 + $0x1bc] sm:$0xf]
    %v2176 = vld [vmem:[#allocation8 + $0x1c0] sm:$0xf]
    %v2177 = vld [vmem:[#allocation8 + $0x1c4] sm:$0xf]
    %v2178 = vld [vmem:[#allocation8 + $0x1c8] sm:$0xf]
    %v2179 = vld [vmem:[#allocation8 + $0x1cc] sm:$0xf]
    %v2180 = vld [vmem:[#allocation8 + $0x1d0] sm:$0xf]
    %v2181 = vld [vmem:[#allocation8 + $0x1d4] sm:$0xf]
    %v2182 = vld [vmem:[#allocation8 + $0x1d8] sm:$0xf]
    %v2183 = vld [vmem:[#allocation8 + $0x1dc] sm:$0xf]
    %v2184 = vld [vmem:[#allocation8 + $0x1e0] sm:$0xf]
    %v2185 = vld [vmem:[#allocation8 + $0x1e4] sm:$0xf]
    %v2186 = vld [vmem:[#allocation8 + $0x1e8] sm:$0xf]
    %v2187 = vld [vmem:[#allocation8 + $0x1ec] sm:$0xf]
    %v2188 = vld [vmem:[#allocation8 + $0x1f0] sm:$0xf]
    %v2189 = vld [vmem:[#allocation8 + $0x1f4] sm:$0xf]
    %v2190 = vld [vmem:[#allocation8 + $0x1f8] sm:$0xf]
    %v2191 = vld [vmem:[#allocation8 + $0x1fc] sm:$0xf]
    %v2192 = vld [vmem:[%s4] sm:$0x1]
    %v2194 = vlaneseq
    %v2195 = vshrl.u32 %v2194, 7
    %v2196 = vsub.s32 0, %v2195
    %v2197 = vrot.slane %v2192, %v2196
    %v2327 = vunpack.c.l.b16 %v2064
    %v2328 = vunpack.c.l.b16 %v2065
    %v2329 = vunpack.c.l.b16 %v2066
    %v2330 = vunpack.c.l.b16 %v2067
    %v2331 = vunpack.c.l.b16 %v2068
    %v2332 = vunpack.c.l.b16 %v2069
    %v2333 = vunpack.c.l.b16 %v2070
    %v2334 = vunpack.c.l.b16 %v2071
    %v2335 = vunpack.c.l.b16 %v2072
    %v2336 = vunpack.c.l.b16 %v2073
    %v2337 = vunpack.c.l.b16 %v2074
    %v2338 = vunpack.c.l.b16 %v2075
    %v2339 = vunpack.c.l.b16 %v2076
    %v2340 = vunpack.c.l.b16 %v2077
    %v2341 = vunpack.c.l.b16 %v2078
    %v2342 = vunpack.c.l.b16 %v2079
    %v2343 = vunpack.c.l.b16 %v2080
    %v2344 = vunpack.c.l.b16 %v2081
    %v2345 = vunpack.c.l.b16 %v2082
    %v2346 = vunpack.c.l.b16 %v2083
    %v2347 = vunpack.c.l.b16 %v2084
    %v2348 = vunpack.c.l.b16 %v2085
    %v2349 = vunpack.c.l.b16 %v2086
    %v2350 = vunpack.c.l.b16 %v2087
    %v2351 = vunpack.c.l.b16 %v2088
    %v2352 = vunpack.c.l.b16 %v2089
    %v2353 = vunpack.c.l.b16 %v2090
    %v2354 = vunpack.c.l.b16 %v2091
    %v2355 = vunpack.c.l.b16 %v2092
    %v2356 = vunpack.c.l.b16 %v2093
    %v2357 = vunpack.c.l.b16 %v2094
    %v2358 = vunpack.c.l.b16 %v2095
    %v2359 = vunpack.c.l.b16 %v2096
    %v2360 = vunpack.c.l.b16 %v2097
    %v2361 = vunpack.c.l.b16 %v2098
    %v2362 = vunpack.c.l.b16 %v2099
    %v2363 = vunpack.c.l.b16 %v2100
    %v2364 = vunpack.c.l.b16 %v2101
    %v2365 = vunpack.c.l.b16 %v2102
    %v2366 = vunpack.c.l.b16 %v2103
    %v2367 = vunpack.c.l.b16 %v2104
    %v2368 = vunpack.c.l.b16 %v2105
    %v2369 = vunpack.c.l.b16 %v2106
    %v2370 = vunpack.c.l.b16 %v2107
    %v2371 = vunpack.c.l.b16 %v2108
    %v2372 = vunpack.c.l.b16 %v2109
    %v2373 = vunpack.c.l.b16 %v2110
    %v2374 = vunpack.c.l.b16 %v2111
    %v2375 = vunpack.c.l.b16 %v2112
    %v2376 = vunpack.c.l.b16 %v2113
    %v2377 = vunpack.c.l.b16 %v2114
    %v2378 = vunpack.c.l.b16 %v2115
    %v2379 = vunpack.c.l.b16 %v2116
    %v2380 = vunpack.c.l.b16 %v2117
    %v2381 = vunpack.c.l.b16 %v2118
    %v2382 = vunpack.c.l.b16 %v2119
    %v2383 = vunpack.c.l.b16 %v2120
    %v2384 = vunpack.c.l.b16 %v2121
    %v2385 = vunpack.c.l.b16 %v2122
    %v2386 = vunpack.c.l.b16 %v2123
    %v2387 = vunpack.c.l.b16 %v2124
    %v2388 = vunpack.c.l.b16 %v2125
    %v2389 = vunpack.c.l.b16 %v2126
    %v2390 = vunpack.c.l.b16 %v2127
    %v2391 = vunpack.c.l.b16 %v2128
    %v2392 = vunpack.c.l.b16 %v2129
    %v2393 = vunpack.c.l.b16 %v2130
    %v2394 = vunpack.c.l.b16 %v2131
    %v2395 = vunpack.c.l.b16 %v2132
    %v2396 = vunpack.c.l.b16 %v2133
    %v2397 = vunpack.c.l.b16 %v2134
    %v2398 = vunpack.c.l.b16 %v2135
    %v2399 = vunpack.c.l.b16 %v2136
    %v2400 = vunpack.c.l.b16 %v2137
    %v2401 = vunpack.c.l.b16 %v2138
    %v2402 = vunpack.c.l.b16 %v2139
    %v2403 = vunpack.c.l.b16 %v2140
    %v2404 = vunpack.c.l.b16 %v2141
    %v2405 = vunpack.c.l.b16 %v2142
    %v2406 = vunpack.c.l.b16 %v2143
    %v2407 = vunpack.c.l.b16 %v2144
    %v2408 = vunpack.c.l.b16 %v2145
    %v2409 = vunpack.c.l.b16 %v2146
    %v2410 = vunpack.c.l.b16 %v2147
    %v2411 = vunpack.c.l.b16 %v2148
    %v2412 = vunpack.c.l.b16 %v2149
    %v2413 = vunpack.c.l.b16 %v2150
    %v2414 = vunpack.c.l.b16 %v2151
    %v2415 = vunpack.c.l.b16 %v2152
    %v2416 = vunpack.c.l.b16 %v2153
    %v2417 = vunpack.c.l.b16 %v2154
    %v2418 = vunpack.c.l.b16 %v2155
    %v2419 = vunpack.c.l.b16 %v2156
    %v2420 = vunpack.c.l.b16 %v2157
    %v2421 = vunpack.c.l.b16 %v2158
    %v2422 = vunpack.c.l.b16 %v2159
    %v2423 = vunpack.c.l.b16 %v2160
    %v2424 = vunpack.c.l.b16 %v2161
    %v2425 = vunpack.c.l.b16 %v2162
    %v2426 = vunpack.c.l.b16 %v2163
    %v2427 = vunpack.c.l.b16 %v2164
    %v2428 = vunpack.c.l.b16 %v2165
    %v2429 = vunpack.c.l.b16 %v2166
    %v2430 = vunpack.c.l.b16 %v2167
    %v2431 = vunpack.c.l.b16 %v2168
    %v2432 = vunpack.c.l.b16 %v2169
    %v2433 = vunpack.c.l.b16 %v2170
    %v2434 = vunpack.c.l.b16 %v2171
    %v2435 = vunpack.c.l.b16 %v2172
    %v2436 = vunpack.c.l.b16 %v2173
    %v2437 = vunpack.c.l.b16 %v2174
    %v2438 = vunpack.c.l.b16 %v2175
    %v2439 = vunpack.c.l.b16 %v2176
    %v2440 = vunpack.c.l.b16 %v2177
    %v2441 = vunpack.c.l.b16 %v2178
    %v2442 = vunpack.c.l.b16 %v2179
    %v2443 = vunpack.c.l.b16 %v2180
    %v2444 = vunpack.c.l.b16 %v2181
    %v2445 = vunpack.c.l.b16 %v2182
    %v2446 = vunpack.c.l.b16 %v2183
    %v2447 = vunpack.c.l.b16 %v2184
    %v2448 = vunpack.c.l.b16 %v2185
    %v2449 = vunpack.c.l.b16 %v2186
    %v2450 = vunpack.c.l.b16 %v2187
    %v2451 = vunpack.c.l.b16 %v2188
    %v2452 = vunpack.c.l.b16 %v2189
    %v2453 = vunpack.c.l.b16 %v2190
    %v2454 = vunpack.c.l.b16 %v2191
    %v2455 = vpack.c.b16 %v2328, %v2327
    %v2456 = vpack.c.b16 %v2330, %v2329
    %v2457 = vpack.c.b16 %v2332, %v2331
    %v2458 = vpack.c.b16 %v2334, %v2333
    %v2459 = vpack.c.b16 %v2336, %v2335
    %v2460 = vpack.c.b16 %v2338, %v2337
    %v2461 = vpack.c.b16 %v2340, %v2339
    %v2462 = vpack.c.b16 %v2342, %v2341
    %v2463 = vpack.c.b16 %v2344, %v2343
    %v2464 = vpack.c.b16 %v2346, %v2345
    %v2465 = vpack.c.b16 %v2348, %v2347
    %v2466 = vpack.c.b16 %v2350, %v2349
    %v2467 = vpack.c.b16 %v2352, %v2351
    %v2468 = vpack.c.b16 %v2354, %v2353
    %v2469 = vpack.c.b16 %v2356, %v2355
    %v2470 = vpack.c.b16 %v2358, %v2357
    %v2471 = vpack.c.b16 %v2360, %v2359
    %v2472 = vpack.c.b16 %v2362, %v2361
    %v2473 = vpack.c.b16 %v2364, %v2363
    %v2474 = vpack.c.b16 %v2366, %v2365
    %v2475 = vpack.c.b16 %v2368, %v2367
    %v2476 = vpack.c.b16 %v2370, %v2369
    %v2477 = vpack.c.b16 %v2372, %v2371
    %v2478 = vpack.c.b16 %v2374, %v2373
    %v2479 = vpack.c.b16 %v2376, %v2375
    %v2480 = vpack.c.b16 %v2378, %v2377
    %v2481 = vpack.c.b16 %v2380, %v2379
    %v2482 = vpack.c.b16 %v2382, %v2381
    %v2483 = vpack.c.b16 %v2384, %v2383
    %v2484 = vpack.c.b16 %v2386, %v2385
    %v2485 = vpack.c.b16 %v2388, %v2387
    %v2486 = vpack.c.b16 %v2390, %v2389
    %v2487 = vpack.c.b16 %v2392, %v2391
    %v2488 = vpack.c.b16 %v2394, %v2393
    %v2489 = vpack.c.b16 %v2396, %v2395
    %v2490 = vpack.c.b16 %v2398, %v2397
    %v2491 = vpack.c.b16 %v2400, %v2399
    %v2492 = vpack.c.b16 %v2402, %v2401
    %v2493 = vpack.c.b16 %v2404, %v2403
    %v2494 = vpack.c.b16 %v2406, %v2405
    %v2495 = vpack.c.b16 %v2408, %v2407
    %v2496 = vpack.c.b16 %v2410, %v2409
    %v2497 = vpack.c.b16 %v2412, %v2411
    %v2498 = vpack.c.b16 %v2414, %v2413
    %v2499 = vpack.c.b16 %v2416, %v2415
    %v2500 = vpack.c.b16 %v2418, %v2417
    %v2501 = vpack.c.b16 %v2420, %v2419
    %v2502 = vpack.c.b16 %v2422, %v2421
    %v2503 = vpack.c.b16 %v2424, %v2423
    %v2504 = vpack.c.b16 %v2426, %v2425
    %v2505 = vpack.c.b16 %v2428, %v2427
    %v2506 = vpack.c.b16 %v2430, %v2429
    %v2507 = vpack.c.b16 %v2432, %v2431
    %v2508 = vpack.c.b16 %v2434, %v2433
    %v2509 = vpack.c.b16 %v2436, %v2435
    %v2510 = vpack.c.b16 %v2438, %v2437
    %v2511 = vpack.c.b16 %v2440, %v2439
    %v2512 = vpack.c.b16 %v2442, %v2441
    %v2513 = vpack.c.b16 %v2444, %v2443
    %v2514 = vpack.c.b16 %v2446, %v2445
    %v2515 = vpack.c.b16 %v2448, %v2447
    %v2516 = vpack.c.b16 %v2450, %v2449
    %v2517 = vpack.c.b16 %v2452, %v2451
    %v2518 = vpack.c.b16 %v2454, %v2453
    %2583 = vmatprep.subr.bf16.mxu0 0
    %2584 = vmatpush1.bf16.msra.mxu0 %v2455
    %2585 = vmatprep.subr.bf16.mxu0 0
    %2586 = vmatpush1.bf16.msra.mxu0 %v2456
    %2587 = vmatprep.subr.bf16.mxu0 0
    %2588 = vmatpush1.bf16.msra.mxu0 %v2457
    %2589 = vmatprep.subr.bf16.mxu0 0
    %2590 = vmatpush1.bf16.msra.mxu0 %v2458
    %2591 = vmatprep.subr.bf16.mxu0 0
    %2592 = vmatpush1.bf16.msra.mxu0 %v2459
    %2593 = vmatprep.subr.bf16.mxu0 0
    %2594 = vmatpush1.bf16.msra.mxu0 %v2460
    %2595 = vmatprep.subr.bf16.mxu0 0
    %2596 = vmatpush1.bf16.msra.mxu0 %v2461
    %2597 = vmatprep.subr.bf16.mxu0 0
    %2598 = vmatpush1.bf16.msra.mxu0 %v2462
    %2599 = vmatprep.subr.bf16.mxu0 0
    %2600 = vmatpush1.bf16.msra.mxu0 %v2463
    %2601 = vmatprep.subr.bf16.mxu0 0
    %2602 = vmatpush1.bf16.msra.mxu0 %v2464
    %2603 = vmatprep.subr.bf16.mxu0 0
    %2604 = vmatpush1.bf16.msra.mxu0 %v2465
    %2605 = vmatprep.subr.bf16.mxu0 0
    %2606 = vmatpush1.bf16.msra.mxu0 %v2466
    %2607 = vmatprep.subr.bf16.mxu0 0
    %2608 = vmatpush1.bf16.msra.mxu0 %v2467
    %2609 = vmatprep.subr.bf16.mxu0 0
    %2610 = vmatpush1.bf16.msra.mxu0 %v2468
    %2611 = vmatprep.subr.bf16.mxu0 0
    %2612 = vmatpush1.bf16.msra.mxu0 %v2469
    %2613 = vmatprep.subr.bf16.mxu0 0
    %2614 = vmatpush1.bf16.msra.mxu0 %v2470
    %2615 = vmatprep.mubr.bf16.mxu0 %v2057
    %2616 = vmatmul.mubr.bf16.gmra.mrb[0].mxu0 %v2056
    %v2617 = vpop.f32.mrb[0].mxu0
    %v2618 = vadd.f32 %v2197, %v2617
    %v2619 = vpop.f32.mrb[0].mxu0
    %v2620 = vpop.f32.mrb[0].mxu0
    %v2621 = vadd.f32 %v2197, %v2620
    %v2622 = vpop.f32.mrb[0].mxu0
    %2623 = vdwg.mxu0
    %2624 = vmatprep.subr.bf16.mxu0 0
    %2625 = vmatpush1.bf16.msra.mxu0 %v2471
    %2626 = vmatprep.subr.bf16.mxu0 0
    %2627 = vmatpush1.bf16.msra.mxu0 %v2472
    %2628 = vmatprep.subr.bf16.mxu0 0
    %2629 = vmatpush1.bf16.msra.mxu0 %v2473
    %2630 = vmatprep.subr.bf16.mxu0 0
    %2631 = vmatpush1.bf16.msra.mxu0 %v2474
    %2632 = vmatprep.subr.bf16.mxu0 0
    %2633 = vmatpush1.bf16.msra.mxu0 %v2475
    %2634 = vmatprep.subr.bf16.mxu0 0
    %2635 = vmatpush1.bf16.msra.mxu0 %v2476
    %2636 = vmatprep.subr.bf16.mxu0 0
    %2637 = vmatpush1.bf16.msra.mxu0 %v2477
    %2638 = vmatprep.subr.bf16.mxu0 0
    %2639 = vmatpush1.bf16.msra.mxu0 %v2478
    %2640 = vmatprep.subr.bf16.mxu0 0
    %2641 = vmatpush1.bf16.msra.mxu0 %v2479
    %2642 = vmatprep.subr.bf16.mxu0 0
    %2643 = vmatpush1.bf16.msra.mxu0 %v2480
    %2644 = vmatprep.subr.bf16.mxu0 0
    %2645 = vmatpush1.bf16.msra.mxu0 %v2481
    %2646 = vmatprep.subr.bf16.mxu0 0
    %2647 = vmatpush1.bf16.msra.mxu0 %v2482
    %2648 = vmatprep.subr.bf16.mxu0 0
    %2649 = vmatpush1.bf16.msra.mxu0 %v2483
    %2650 = vmatprep.subr.bf16.mxu0 0
    %2651 = vmatpush1.bf16.msra.mxu0 %v2484
    %2652 = vmatprep.subr.bf16.mxu0 0
    %2653 = vmatpush1.bf16.msra.mxu0 %v2485
    %2654 = vmatprep.subr.bf16.mxu0 0
    %2655 = vmatpush1.bf16.msra.mxu0 %v2486
    %2656 = vmatprep.mubr.bf16.mxu0 %v2059
    %2657 = vmatmul.mubr.bf16.gmra.mrb[0].mxu0 %v2058
    %v2658 = vpop.f32.mrb[0].mxu0
    %v2659 = vadd.f32 %v2618, %v2658
    %v2660 = vpop.f32.mrb[0].mxu0
    %v2661 = vpop.f32.mrb[0].mxu0
    %v2662 = vadd.f32 %v2621, %v2661
    %v2663 = vpop.f32.mrb[0].mxu0
    %2664 = vdwg.mxu0
    %2665 = vmatprep.subr.bf16.mxu0 0
    %2666 = vmatpush1.bf16.msra.mxu0 %v2487
    %2667 = vmatprep.subr.bf16.mxu0 0
    %2668 = vmatpush1.bf16.msra.mxu0 %v2488
    %2669 = vmatprep.subr.bf16.mxu0 0
    %2670 = vmatpush1.bf16.msra.mxu0 %v2489
    %2671 = vmatprep.subr.bf16.mxu0 0
    %2672 = vmatpush1.bf16.msra.mxu0 %v2490
    %2673 = vmatprep.subr.bf16.mxu0 0
    %2674 = vmatpush1.bf16.msra.mxu0 %v2491
    %2675 = vmatprep.subr.bf16.mxu0 0
    %2676 = vmatpush1.bf16.msra.mxu0 %v2492
    %2677 = vmatprep.subr.bf16.mxu0 0
    %2678 = vmatpush1.bf16.msra.mxu0 %v2493
    %2679 = vmatprep.subr.bf16.mxu0 0
    %2680 = vmatpush1.bf16.msra.mxu0 %v2494
    %2681 = vmatprep.subr.bf16.mxu0 0
    %2682 = vmatpush1.bf16.msra.mxu0 %v2495
    %2683 = vmatprep.subr.bf16.mxu0 0
    %2684 = vmatpush1.bf16.msra.mxu0 %v2496
    %2685 = vmatprep.subr.bf16.mxu0 0
    %2686 = vmatpush1.bf16.msra.mxu0 %v2497
    %2687 = vmatprep.subr.bf16.mxu0 0
    %2688 = vmatpush1.bf16.msra.mxu0 %v2498
    %2689 = vmatprep.subr.bf16.mxu0 0
    %2690 = vmatpush1.bf16.msra.mxu0 %v2499
    %2691 = vmatprep.subr.bf16.mxu0 0
    %2692 = vmatpush1.bf16.msra.mxu0 %v2500
    %2693 = vmatprep.subr.bf16.mxu0 0
    %2694 = vmatpush1.bf16.msra.mxu0 %v2501
    %2695 = vmatprep.subr.bf16.mxu0 0
    %2696 = vmatpush1.bf16.msra.mxu0 %v2502
    %2697 = vmatprep.mubr.bf16.mxu0 %v2061
    %2698 = vmatmul.mubr.bf16.gmra.mrb[0].mxu0 %v2060
    %v2699 = vpop.f32.mrb[0].mxu0
    %v2700 = vadd.f32 %v2659, %v2699
    %v2701 = vpop.f32.mrb[0].mxu0
    %v2702 = vpop.f32.mrb[0].mxu0
    %v2703 = vadd.f32 %v2662, %v2702
    %v2704 = vpop.f32.mrb[0].mxu0
    %2705 = vdwg.mxu0
    %2706 = vmatprep.subr.bf16.mxu0 0
    %2707 = vmatpush1.bf16.msra.mxu0 %v2503
    %2708 = vmatprep.subr.bf16.mxu0 0
    %2709 = vmatpush1.bf16.msra.mxu0 %v2504
    %2710 = vmatprep.subr.bf16.mxu0 0
    %2711 = vmatpush1.bf16.msra.mxu0 %v2505
    %2712 = vmatprep.subr.bf16.mxu0 0
    %2713 = vmatpush1.bf16.msra.mxu0 %v2506
    %2714 = vmatprep.subr.bf16.mxu0 0
    %2715 = vmatpush1.bf16.msra.mxu0 %v2507
    %2716 = vmatprep.subr.bf16.mxu0 0
    %2717 = vmatpush1.bf16.msra.mxu0 %v2508
    %2718 = vmatprep.subr.bf16.mxu0 0
    %2719 = vmatpush1.bf16.msra.mxu0 %v2509
    %2720 = vmatprep.subr.bf16.mxu0 0
    %2721 = vmatpush1.bf16.msra.mxu0 %v2510
    %2722 = vmatprep.subr.bf16.mxu0 0
    %2723 = vmatpush1.bf16.msra.mxu0 %v2511
    %2724 = vmatprep.subr.bf16.mxu0 0
    %2725 = vmatpush1.bf16.msra.mxu0 %v2512
    %2726 = vmatprep.subr.bf16.mxu0 0
    %2727 = vmatpush1.bf16.msra.mxu0 %v2513
    %2728 = vmatprep.subr.bf16.mxu0 0
    %2729 = vmatpush1.bf16.msra.mxu0 %v2514
    %2730 = vmatprep.subr.bf16.mxu0 0
    %2731 = vmatpush1.bf16.msra.mxu0 %v2515
    %2732 = vmatprep.subr.bf16.mxu0 0
    %2733 = vmatpush1.bf16.msra.mxu0 %v2516
    %2734 = vmatprep.subr.bf16.mxu0 0
    %2735 = vmatpush1.bf16.msra.mxu0 %v2517
    %2736 = vmatprep.subr.bf16.mxu0 0
    %2737 = vmatpush1.bf16.msra.mxu0 %v2518
    %2738 = vmatprep.mubr.bf16.mxu0 %v2063
    %2739 = vmatmul.mubr.bf16.gmra.mrb[0].mxu0 %v2062
    %v2740 = vpop.f32.mrb[0].mxu0
    %v2741 = vadd.f32 %v2700, %v2740
    %v2742 = vpop.f32.mrb[0].mxu0
    %v2743 = vpop.f32.mrb[0].mxu0
    %v2744 = vadd.f32 %v2703, %v2743
    %v2745 = vpop.f32.mrb[0].mxu0
    %2746 = vdwg.mxu0
    %v2747 = vmax.f32 %v2741, 0.0
    %v2748 = vmax.f32 %v2744, 0.0
    %v2749 = vpack.c.bf16 %v2748, %v2747
    %v2750 = vld [vmem:[#allocation10] sm:$0xf]
    %v2751 = vld [vmem:[#allocation10 + $0x4] sm:$0xf]
    %v2752 = vld [vmem:[#allocation10 + $0x8] sm:$0xf]
    %v2753 = vld [vmem:[#allocation10 + $0xc] sm:$0xf]
    %v2754 = vld [vmem:[#allocation10 + $0x10] sm:$0xf]
    %v2755 = vld [vmem:[#allocation10 + $0x14] sm:$0xf]
    %v2756 = vld [vmem:[#allocation10 + $0x18] sm:$0xf]
    %v2757 = vld [vmem:[#allocation10 + $0x1c] sm:$0xf]
    %v2758 = vld [vmem:[#allocation10 + $0x20] sm:$0xf]
    %v2759 = vld [vmem:[#allocation10 + $0x24] sm:$0xf]
    %v2760 = vld [vmem:[#allocation10 + $0x28] sm:$0xf]
    %v2761 = vld [vmem:[#allocation10 + $0x2c] sm:$0xf]
    %v2762 = vld [vmem:[#allocation10 + $0x30] sm:$0xf]
    %v2763 = vld [vmem:[#allocation10 + $0x34] sm:$0xf]
    %v2764 = vld [vmem:[#allocation10 + $0x38] sm:$0xf]
    %v2765 = vld [vmem:[#allocation10 + $0x3c] sm:$0xf]
    %v2766 = vld [vmem:[%s6] sm:$0x1]
    %v2768 = vlaneseq
    %v2769 = vshrl.u32 %v2768, 7
    %v2770 = vsub.s32 0, %v2769
    %v2771 = vrot.slane %v2766, %v2770
    %v2789 = vunpack.c.l.b16 %v2750
    %v2790 = vunpack.c.l.b16 %v2751
    %v2791 = vunpack.c.l.b16 %v2752
    %v2792 = vunpack.c.l.b16 %v2753
    %v2793 = vunpack.c.l.b16 %v2754
    %v2794 = vunpack.c.l.b16 %v2755
    %v2795 = vunpack.c.l.b16 %v2756
    %v2796 = vunpack.c.l.b16 %v2757
    %v2797 = vunpack.c.l.b16 %v2758
    %v2798 = vunpack.c.l.b16 %v2759
    %v2799 = vunpack.c.l.b16 %v2760
    %v2800 = vunpack.c.l.b16 %v2761
    %v2801 = vunpack.c.l.b16 %v2762
    %v2802 = vunpack.c.l.b16 %v2763
    %v2803 = vunpack.c.l.b16 %v2764
    %v2804 = vunpack.c.l.b16 %v2765
    %v2805 = vpack.c.b16 %v2790, %v2789
    %v2806 = vpack.c.b16 %v2792, %v2791
    %v2807 = vpack.c.b16 %v2794, %v2793
    %v2808 = vpack.c.b16 %v2796, %v2795
    %v2809 = vpack.c.b16 %v2798, %v2797
    %v2810 = vpack.c.b16 %v2800, %v2799
    %v2811 = vpack.c.b16 %v2802, %v2801
    %v2812 = vpack.c.b16 %v2804, %v2803
    %2821 = vmatprep.subr.bf16.mxu0 0
    %2822 = vmatpush1.bf16.msra.mxu0 %v2805
    %2823 = vmatprep.subr.bf16.mxu0 0
    %2824 = vmatpush1.bf16.msra.mxu0 %v2806
    %2825 = vmatprep.subr.bf16.mxu0 0
    %2826 = vmatpush1.bf16.msra.mxu0 %v2807
    %2827 = vmatprep.subr.bf16.mxu0 0
    %2828 = vmatpush1.bf16.msra.mxu0 %v2808
    %2829 = vmatprep.subr.bf16.mxu0 0
    %2830 = vmatpush1.bf16.msra.mxu0 %v2809
    %2831 = vmatprep.subr.bf16.mxu0 0
    %2832 = vmatpush1.bf16.msra.mxu0 %v2810
    %2833 = vmatprep.subr.bf16.mxu0 0
    %2834 = vmatpush1.bf16.msra.mxu0 %v2811
    %2835 = vmatprep.subr.bf16.mxu0 0
    %2836 = vmatpush1.bf16.msra.mxu0 %v2812
    %2837 = vmatprep.subr.bf16.mxu0 0
    %2838 = vmatpush1.bf16.msra.mxu0 0
    %2839 = vmatprep.subr.bf16.mxu0 0
    %2840 = vmatpush1.bf16.msra.mxu0 0
    %2841 = vmatprep.subr.bf16.mxu0 0
    %2842 = vmatpush1.bf16.msra.mxu0 0
    %2843 = vmatprep.subr.bf16.mxu0 0
    %2844 = vmatpush1.bf16.msra.mxu0 0
    %2845 = vmatprep.subr.bf16.mxu0 0
    %2846 = vmatpush1.bf16.msra.mxu0 0
    %2847 = vmatprep.subr.bf16.mxu0 0
    %2848 = vmatpush1.bf16.msra.mxu0 0
    %2849 = vmatprep.subr.bf16.mxu0 0
    %2850 = vmatpush1.bf16.msra.mxu0 0
    %2851 = vmatprep.subr.bf16.mxu0 0
    %2852 = vmatpush1.bf16.msra.mxu0 0
    %2853 = vmatprep.mubr.bf16.mxu0 0
    %2854 = vmatmul.mubr.bf16.gmra.mrb[0].mxu0 %v2749
    %v2855 = vpop.f32.mrb[0].mxu0
    %v2856 = vadd.f32 %v2771, %v2855
    %v2857 = vpop.f32.mrb[0].mxu0
    %v2858 = vpop.f32.mrb[0].mxu0
    %v2859 = vadd.f32 %v2771, %v2858
    %v2860 = vpop.f32.mrb[0].mxu0
    %2861 = vdwg.mxu0
    %2862 = vst [vmem:[#allocation11] sm:$0xff] %v2856
    %2863 = vst [vmem:[#allocation11 + $0x8] sm:$0xff] %v2859
    // Predicated region
    $region50: #{tpu_custom_call.1} parent=1 // pred_check
      _
    $region51: #{tpu_custom_call.1} parent=1 // pred_check_branch
      %2865 = sbr.rel (0) target = $region53
    $region52: #{tpu_custom_call.1} parent=1 // pred_region
      %s2867 = ssub.s32 256, 256
      %2868 = vsyncadd [#allocation4], %s2867
      %s2869 = sshll.u32 [#allocation11], 4
      %s2870 = int_to_ptr.vmem [resolvable:$true] %s2869
      %2875 = dma.vmem_to_hbm [thread:$0]  %s2870, 256, %s7, [#allocation4], 128, 128, 8
    $region53: #{tpu_custom_call.1} parent=1 // pred_fallthru
      _
    // Predicated region
    $region54: #{tpu_custom_call.1} parent=1 // pred_check
      _
    $region55: #{tpu_custom_call.1} parent=1 // pred_check_branch
      %2877 = sbr.rel (0) target = $region57
    $region56: #{tpu_custom_call.1} parent=1 // pred_region
      %2878 = dma.done [#allocation4], 256
    $region57: #{tpu_custom_call.1} parent=1 // pred_fallthru
      _
    %2879 = vsyncpa [#allocation3], 1
    %2880 = vsyncpa [#allocation6], 1
    %2881 = vsyncpa [#allocation9], 1
    %2882 = vsyncpa [#allocation4], 1

</llo_original>
